<compile_context>
chip_gen: v6e
topology: v6e:2x2x1
jax: 0.10.0
libtpu: 0.0.40
codegen_flags: <defaults>
</compile_context>

<pallas_src>
import functools

import jax
import jax.numpy as jnp
from jax.experimental import pallas as pl
from jax.experimental.pallas import tpu as pltpu


def _vmem_limit_bytes():
    """Generation-aware VMEM cap: ~3/4 of physical (64 MiB v7x, 128 MiB v5e/v6e)."""
    try:
        cap = pltpu.get_tpu_info().vmem_capacity_bytes
    except Exception:  # pragma: no cover - conservative fallback
        cap = 64 * 1024 * 1024
    return int(cap * 3 // 4)


def _pick_block_b(B, S, D, h, dtype, has_mask, shared_qkv):
    """Largest batch block that (a) divides B, (b) fits a VMEM budget,
    (c) leaves >= 2 parallel grid steps so both v7x TensorCores get work."""
    itemsize = jnp.dtype(dtype).itemsize
    io_rows = (1 if shared_qkv else 3) + 1                 # input + output slabs
    per_row = io_rows * S * D * itemsize * 2               # double-buffered pipeline
    per_row += h * S * S * (4 + 2)                         # f32 scores/exp + bf16 copy
    per_row += 4 * S * D * (4 + 2)                         # q/k/v/out head tiles f32+bf16
    if has_mask:
        per_row += S * S * 2 * 2                           # bf16 additive mask (dbl-buf)
    budget = max(_vmem_limit_bytes() // 3, 4 * 1024 * 1024)
    bb = max(1, min(B, budget // max(per_row, 1)))
    if B >= 2:
        bb = min(bb, B // 2)                               # keep >=2 parallel steps
    while B % bb:
        bb -= 1
    return bb


def _mha_kernel(*refs, h, d_k, has_mask, shared_qkv, compute_dtype):
    idx = 0
    if shared_qkv:
        x_ref = refs[idx]; idx += 1
        q_in = k_in = v_in = x_ref
    else:
        q_in, k_in, v_in = refs[idx:idx + 3]; idx += 3
    wq_ref, wk_ref, wv_ref, bq_ref, bk_ref, bv_ref = refs[idx:idx + 6]; idx += 6
    bias_ref = None
    if has_mask:
        bias_ref = refs[idx]; idx += 1
    o_ref = refs[idx]

    BB, S, D = q_in.shape
    f32 = jnp.float32
    cdt = compute_dtype

    def project(x2, w_ref, b_ref):
        # Lane-dense (BB*S, D) @ (D, D) + bias.  Attention scale already folded
        # into wq/bq by the wrapper.
        return (jnp.dot(x2, w_ref[...], preferred_element_type=f32)
                + b_ref[...].astype(f32))

    if shared_qkv:
        x2 = q_in[...].reshape(BB * S, D)
        q = project(x2, wq_ref, bq_ref)
        k = project(x2, wk_ref, bk_ref)
        v = project(x2, wv_ref, bv_ref)
    else:
        q = project(q_in[...].reshape(BB * S, D), wq_ref, bq_ref)
        k = project(k_in[...].reshape(BB * S, D), wk_ref, bk_ref)
        v = project(v_in[...].reshape(BB * S, D), wv_ref, bv_ref)

    # Split heads -> (BB*h, S, d_k) in the compute dtype (bf16 by default).
    def split_heads(y):
        return (y.reshape(BB, S, h, d_k)
                 .transpose(0, 2, 1, 3)
                 .reshape(BB * h, S, d_k)
                 .astype(cdt))

    qh = split_heads(q)
    kh = split_heads(k)
    vh = split_heads(v)

    # scores[b, i, j] = sum_d qh[b, i, d] * kh[b, j, d]  (no explicit k.T)
    scores = jnp.einsum("bqd,bkd->bqk", qh, kh,
                        preferred_element_type=f32).reshape(BB, h, S, S)

    if bias_ref is not None:
        # Additive mask (0 / -1e9), broadcast over heads.
        scores = scores + bias_ref[...].astype(f32)[:, None, :, :]

    # Numerically stable softmax with deferred normalization.
    m = jnp.max(scores, axis=-1, keepdims=True)
    e = jnp.exp(scores - m)                                  # (BB, h, S, S) f32
    l = jnp.sum(e, axis=-1, keepdims=True)                   # (BB, h, S, 1) f32

    out3 = jnp.einsum("bqk,bkd->bqd",
                      e.reshape(BB * h, S, S).astype(cdt), vh,
                      preferred_element_type=f32)            # (BB*h, S, d_k)
    out4 = out3.reshape(BB, h, S, d_k) * pl.reciprocal(l, approx=True)

    # Merge heads -> (BB, S, D): single lane-dense store.
    o_ref[...] = out4.transpose(0, 2, 1, 3).reshape(BB, S, D).astype(o_ref.dtype)


def multi_headed_attention(query, key, value, mask, params, *, h,
                           compute_dtype=jnp.bfloat16, block_b=None):
    """query/key/value: [B, S, D]; mask: broadcastable to [B, 1, S, S] or None.
    Returns [B, S, D] (heads concatenated), matching the PyTorch module's forward
    (which has no output projection)."""
    B, S, D = query.shape
    assert D % h == 0
    d_k = D // h
    scale = 1.0 / (d_k ** 0.5)
    dtype = query.dtype

    shared_qkv = (query is key) and (query is value)
    has_mask = mask is not None

    # PyTorch nn.Linear: y = x @ W.T + b (W is (D_out, D_in)).  Pre-transpose
    # once at trace time and fold the attention scale into the Q projection.
    wq = (params["wq"].T * scale).astype(dtype)
    bq = (params["bq"] * scale).reshape(1, D).astype(dtype)
    wk = params["wk"].T.astype(dtype)
    bk = params["bk"].reshape(1, D).astype(dtype)
    wv = params["wv"].T.astype(dtype)
    bv = params["bv"].reshape(1, D).astype(dtype)

    if has_mask:
        # Pre-materialize an additive bf16 bias: one VPU add in-kernel, half the
        # mask DMA of the original int32 (B,1,S,S) stream.
        bias = jnp.where(jnp.broadcast_to(mask, (B, 1, S, S)) == 0,
                         jnp.float32(-1e9), jnp.float32(0.0))
        bias = bias.reshape(B, S, S).astype(jnp.bfloat16)

    BB = block_b if block_b is not None else _pick_block_b(
        B, S, D, h, dtype, has_mask, shared_qkv)
    assert B % BB == 0
    grid = (B // BB,)

    x_spec = pl.BlockSpec((BB, S, D), lambda b: (b, 0, 0))
    w_spec = pl.BlockSpec((D, D), lambda b: (0, 0))   # grid-invariant -> VMEM resident
    b_spec = pl.BlockSpec((1, D), lambda b: (0, 0))
    o_spec = pl.BlockSpec((BB, S, D), lambda b: (b, 0, 0))

    in_specs = []
    args = []
    if shared_qkv:
        in_specs.append(x_spec)
        args.append(query)
    else:
        in_specs += [x_spec, x_spec, x_spec]
        args += [query, key, value]
    in_specs += [w_spec, w_spec, w_spec, b_spec, b_spec, b_spec]
    args += [wq, wk, wv, bq, bk, bv]
    if has_mask:
        in_specs.append(pl.BlockSpec((BB, S, S), lambda b: (b, 0, 0)))
        args.append(bias)

    return pl.pallas_call(
        functools.partial(_mha_kernel, h=h, d_k=d_k, has_mask=has_mask,
                          shared_qkv=shared_qkv, compute_dtype=compute_dtype),
        out_shape=jax.ShapeDtypeStruct((B, S, D), dtype),
        grid_spec=pltpu.PrefetchScalarGridSpec(
            num_scalar_prefetch=0,
            grid=grid,
            in_specs=in_specs,
            out_specs=o_spec,
        ),
        compiler_params=pltpu.CompilerParams(
            dimension_semantics=("parallel",),
            vmem_limit_bytes=_vmem_limit_bytes(),
        ),
    )(*args)


def _reference(query, key, value, mask, params, *, h):
    B, S, D = query.shape
    d_k = D // h
    scale = 1.0 / (d_k ** 0.5)

    def proj(x, w, b):
        y = x @ w.T + b
        return y.reshape(B, S, h, d_k).transpose(0, 2, 1, 3)  # (B, h, S, d_k)

    q = proj(query, params["wq"], params["bq"])
    k = proj(key, params["wk"], params["bk"])
    v = proj(value, params["wv"], params["bv"])
    scores = jnp.einsum("bhqd,bhkd->bhqk", q, k) * scale
    if mask is not None:
        scores = jnp.where(mask == 0, -1e9, scores)
    p = jax.nn.softmax(scores, axis=-1)
    out = jnp.einsum("bhqk,bhkd->bhqd", p, v)
    return out.transpose(0, 2, 1, 3).reshape(B, S, D)


if __name__ == "__main__":
    B, S, D, H = 2, 8, 32, 4

    key0 = jax.random.PRNGKey(0)
    keys = jax.random.split(key0, 12)

    query = jax.random.normal(keys[0], (B, S, D), dtype=jnp.float32)
    key_in = jax.random.normal(keys[1], (B, S, D), dtype=jnp.float32)
    value = jax.random.normal(keys[2], (B, S, D), dtype=jnp.float32)

    # Deterministic parameters (nn.Linear shapes: weight (D, D), bias (D,))
    params = {
        "wq": jax.random.normal(keys[3], (D, D), dtype=jnp.float32) * 0.05,
        "bq": jax.random.normal(keys[4], (D,), dtype=jnp.float32) * 0.05,
        "wk": jax.random.normal(keys[5], (D, D), dtype=jnp.float32) * 0.05,
        "bk": jax.random.normal(keys[6], (D,), dtype=jnp.float32) * 0.05,
        "wv": jax.random.normal(keys[7], (D, D), dtype=jnp.float32) * 0.05,
        "bv": jax.random.normal(keys[8], (D,), dtype=jnp.float32) * 0.05,
    }

    # Causal mask, shape (B, 1, S, S), 1 = keep, 0 = masked (like PyTorch usage)
    causal = jnp.tril(jnp.ones((S, S), dtype=jnp.int32))
    mask = jnp.broadcast_to(causal[None, None], (B, 1, S, S))

    # bf16 attention matmuls + EUP approximate reciprocal -> relaxed tolerance.
    TOL = dict(atol=1e-2, rtol=1e-2)

    # 1) Cross-attention style (distinct q/k/v) with mask.
    out = jax.block_until_ready(
        multi_headed_attention(query, key_in, value, mask, params, h=H))
    ref = _reference(query, key_in, value, mask, params, h=H)
    assert out.shape == (B, S, D)
    assert jnp.allclose(out, ref, **TOL), "mismatch vs reference (masked)"

    # 2) Self-attention (q is k is v): single input DMA stream, no mask DMA.
    out_sa = jax.block_until_ready(
        multi_headed_attention(query, query, query, None, params, h=H))
    ref_sa = _reference(query, query, query, None, params, h=H)
    assert jnp.allclose(out_sa, ref_sa, **TOL), "mismatch vs reference (self, no mask)"

    # 3) Batch-blocked path (BB > 1) with a larger batch, self-attention + mask.
    B2 = 4
    x2 = jax.random.normal(keys[9], (B2, S, D), dtype=jnp.float32)
    mask2 = jnp.broadcast_to(causal[None, None], (B2, 1, S, S))
    out_bb = jax.block_until_ready(
        multi_headed_attention(x2, x2, x2, mask2, params, h=H))
    ref_bb = _reference(x2, x2, x2, mask2, params, h=H)
    assert jnp.allclose(out_bb, ref_bb, **TOL), "mismatch vs reference (batch-blocked)"

    print("KERNEL_OK")
</pallas_src>

<mosaic_0001>
module attributes {stable_mosaic.version = 11 : i64} {
  func.func @_mha_kernel(%arg0: i32, %arg1: memref<1x8x32xf32, #tpu.memory_space<vmem>>, %arg2: memref<1x8x32xf32, #tpu.memory_space<vmem>>, %arg3: memref<1x8x32xf32, #tpu.memory_space<vmem>>, %arg4: memref<32x32xf32, #tpu.memory_space<vmem>>, %arg5: memref<32x32xf32, #tpu.memory_space<vmem>>, %arg6: memref<32x32xf32, #tpu.memory_space<vmem>>, %arg7: memref<1x32xf32, #tpu.memory_space<vmem>>, %arg8: memref<1x32xf32, #tpu.memory_space<vmem>>, %arg9: memref<1x32xf32, #tpu.memory_space<vmem>>, %arg10: memref<1x8x8xbf16, #tpu.memory_space<vmem>>, %arg11: memref<1x8x32xf32, #tpu.memory_space<vmem>>) attributes {dimension_semantics = [#tpu.dimension_semantics<parallel>], iteration_bounds = array<i64: 2>, scalar_prefetch = 0 : i64, scratch_operands = 0 : i64, tpu.core_type = #tpu.core_type<tc>, window_params = [{transform_indices = @transform_0, window_bounds = array<i64: 1, 8, 32>}, {transform_indices = @transform_1, window_bounds = array<i64: 1, 8, 32>}, {transform_indices = @transform_2, window_bounds = array<i64: 1, 8, 32>}, {pipeline_mode = #tpu.pipeline_mode<synchronous>, transform_indices = @transform_3, window_bounds = array<i64: 32, 32>}, {pipeline_mode = #tpu.pipeline_mode<synchronous>, transform_indices = @transform_4, window_bounds = array<i64: 32, 32>}, {pipeline_mode = #tpu.pipeline_mode<synchronous>, transform_indices = @transform_5, window_bounds = array<i64: 32, 32>}, {pipeline_mode = #tpu.pipeline_mode<synchronous>, transform_indices = @transform_6, window_bounds = array<i64: 1, 32>}, {pipeline_mode = #tpu.pipeline_mode<synchronous>, transform_indices = @transform_7, window_bounds = array<i64: 1, 32>}, {pipeline_mode = #tpu.pipeline_mode<synchronous>, transform_indices = @transform_8, window_bounds = array<i64: 1, 32>}, {transform_indices = @transform_9, window_bounds = array<i64: 1, 8, 8>}, {transform_indices = @transform_10, window_bounds = array<i64: 1, 8, 32>}]} {
    %c0 = arith.constant 0 : index
    %c0_0 = arith.constant 0 : index
    %c0_1 = arith.constant 0 : index
    %0 = vector.load %arg1[%c0, %c0_0, %c0_1] : memref<1x8x32xf32, #tpu.memory_space<vmem>>, vector<1x8x32xf32>
    %1 = vector.shape_cast %0 : vector<1x8x32xf32> to vector<8x32xf32>
    %c0_2 = arith.constant 0 : index
    %c0_3 = arith.constant 0 : index
    %2 = vector.load %arg4[%c0_2, %c0_3] : memref<32x32xf32, #tpu.memory_space<vmem>>, vector<32x32xf32>
    %cst = arith.constant dense<0.000000e+00> : vector<8x32xf32>
    %3 = tpu.matmul %1, %2, %cst {dimension_numbers = #tpu.dot_dimension_numbers<[1], [0], [0], [1], [0, 0, 1, 1], [], []>} : vector<8x32xf32>, vector<32x32xf32>, vector<8x32xf32> -> vector<8x32xf32>
    %c0_4 = arith.constant 0 : index
    %c0_5 = arith.constant 0 : index
    %4 = vector.load %arg7[%c0_4, %c0_5] : memref<1x32xf32, #tpu.memory_space<vmem>>, vector<1x32xf32>
    %5 = vector.broadcast %4 : vector<1x32xf32> to vector<8x32xf32>
    %6 = arith.addf %3, %5 : vector<8x32xf32>
    %c0_6 = arith.constant 0 : index
    %c0_7 = arith.constant 0 : index
    %c0_8 = arith.constant 0 : index
    %7 = vector.load %arg2[%c0_6, %c0_7, %c0_8] : memref<1x8x32xf32, #tpu.memory_space<vmem>>, vector<1x8x32xf32>
    %8 = vector.shape_cast %7 : vector<1x8x32xf32> to vector<8x32xf32>
    %c0_9 = arith.constant 0 : index
    %c0_10 = arith.constant 0 : index
    %9 = vector.load %arg5[%c0_9, %c0_10] : memref<32x32xf32, #tpu.memory_space<vmem>>, vector<32x32xf32>
    %cst_11 = arith.constant dense<0.000000e+00> : vector<8x32xf32>
    %10 = tpu.matmul %8, %9, %cst_11 {dimension_numbers = #tpu.dot_dimension_numbers<[1], [0], [0], [1], [0, 0, 1, 1], [], []>} : vector<8x32xf32>, vector<32x32xf32>, vector<8x32xf32> -> vector<8x32xf32>
    %c0_12 = arith.constant 0 : index
    %c0_13 = arith.constant 0 : index
    %11 = vector.load %arg8[%c0_12, %c0_13] : memref<1x32xf32, #tpu.memory_space<vmem>>, vector<1x32xf32>
    %12 = vector.broadcast %11 : vector<1x32xf32> to vector<8x32xf32>
    %13 = arith.addf %10, %12 : vector<8x32xf32>
    %c0_14 = arith.constant 0 : index
    %c0_15 = arith.constant 0 : index
    %c0_16 = arith.constant 0 : index
    %14 = vector.load %arg3[%c0_14, %c0_15, %c0_16] : memref<1x8x32xf32, #tpu.memory_space<vmem>>, vector<1x8x32xf32>
    %15 = vector.shape_cast %14 : vector<1x8x32xf32> to vector<8x32xf32>
    %c0_17 = arith.constant 0 : index
    %c0_18 = arith.constant 0 : index
    %16 = vector.load %arg6[%c0_17, %c0_18] : memref<32x32xf32, #tpu.memory_space<vmem>>, vector<32x32xf32>
    %cst_19 = arith.constant dense<0.000000e+00> : vector<8x32xf32>
    %17 = tpu.matmul %15, %16, %cst_19 {dimension_numbers = #tpu.dot_dimension_numbers<[1], [0], [0], [1], [0, 0, 1, 1], [], []>} : vector<8x32xf32>, vector<32x32xf32>, vector<8x32xf32> -> vector<8x32xf32>
    %c0_20 = arith.constant 0 : index
    %c0_21 = arith.constant 0 : index
    %18 = vector.load %arg9[%c0_20, %c0_21] : memref<1x32xf32, #tpu.memory_space<vmem>>, vector<1x32xf32>
    %19 = vector.broadcast %18 : vector<1x32xf32> to vector<8x32xf32>
    %20 = arith.addf %17, %19 : vector<8x32xf32>
    %21 = vector.shape_cast %6 : vector<8x32xf32> to vector<1x8x4x8xf32>
    %22 = tpu.transpose %21, [0, 2, 1, 3] : vector<1x8x4x8xf32> -> vector<1x4x8x8xf32>
    %23 = vector.shape_cast %22 : vector<1x4x8x8xf32> to vector<4x8x8xf32>
    %24 = arith.truncf %23 : vector<4x8x8xf32> to vector<4x8x8xbf16>
    %25 = vector.shape_cast %13 : vector<8x32xf32> to vector<1x8x4x8xf32>
    %26 = tpu.transpose %25, [0, 2, 1, 3] : vector<1x8x4x8xf32> -> vector<1x4x8x8xf32>
    %27 = vector.shape_cast %26 : vector<1x4x8x8xf32> to vector<4x8x8xf32>
    %28 = arith.truncf %27 : vector<4x8x8xf32> to vector<4x8x8xbf16>
    %29 = vector.shape_cast %20 : vector<8x32xf32> to vector<1x8x4x8xf32>
    %30 = tpu.transpose %29, [0, 2, 1, 3] : vector<1x8x4x8xf32> -> vector<1x4x8x8xf32>
    %31 = vector.shape_cast %30 : vector<1x4x8x8xf32> to vector<4x8x8xf32>
    %32 = arith.truncf %31 : vector<4x8x8xf32> to vector<4x8x8xbf16>
    "tpu.trace_start"() <{level = 10 : i32, message = "bqd,bkd->bqk"}> : () -> ()
    %cst_22 = arith.constant dense<0.000000e+00> : vector<4x8x8xf32>
    %33 = tpu.matmul %24, %28, %cst_22 {dimension_numbers = #tpu.dot_dimension_numbers<[2], [2], [1], [1], [0, 0, 0, 1, 1, 1], [0], [0]>} : vector<4x8x8xbf16>, vector<4x8x8xbf16>, vector<4x8x8xf32> -> vector<4x8x8xf32>
    "tpu.trace_stop"() : () -> ()
    %34 = vector.shape_cast %33 : vector<4x8x8xf32> to vector<1x4x8x8xf32>
    %c0_23 = arith.constant 0 : index
    %c0_24 = arith.constant 0 : index
    %c0_25 = arith.constant 0 : index
    %35 = vector.load %arg10[%c0_23, %c0_24, %c0_25] : memref<1x8x8xbf16, #tpu.memory_space<vmem>>, vector<1x8x8xbf16>
    %36 = arith.extf %35 : vector<1x8x8xbf16> to vector<1x8x8xf32>
    %37 = vector.shape_cast %36 : vector<1x8x8xf32> to vector<1x1x8x8xf32>
    %38 = vector.broadcast %37 : vector<1x1x8x8xf32> to vector<1x4x8x8xf32>
    %39 = arith.addf %34, %38 : vector<1x4x8x8xf32>
    %cst_26 = arith.constant dense<0xFF800000> : vector<1x4x8xf32>
    %40 = vector.multi_reduction <maximumf>, %39, %cst_26 [3] : vector<1x4x8x8xf32> to vector<1x4x8xf32>
    %41 = vector.shape_cast %40 : vector<1x4x8xf32> to vector<1x4x8x1xf32>
    %42 = vector.broadcast %41 : vector<1x4x8x1xf32> to vector<1x4x8x8xf32>
    %43 = arith.subf %39, %42 : vector<1x4x8x8xf32>
    %44 = math.exp %43 : vector<1x4x8x8xf32>
    %cst_27 = arith.constant dense<0.000000e+00> : vector<1x4x8xf32>
    %45 = vector.multi_reduction <add>, %44, %cst_27 [3] : vector<1x4x8x8xf32> to vector<1x4x8xf32>
    %46 = vector.shape_cast %45 : vector<1x4x8xf32> to vector<1x4x8x1xf32>
    %47 = vector.shape_cast %44 : vector<1x4x8x8xf32> to vector<4x8x8xf32>
    %48 = arith.truncf %47 : vector<4x8x8xf32> to vector<4x8x8xbf16>
    "tpu.trace_start"() <{level = 10 : i32, message = "bqk,bkd->bqd"}> : () -> ()
    %cst_28 = arith.constant dense<0.000000e+00> : vector<4x8x8xf32>
    %49 = tpu.matmul %48, %32, %cst_28 {dimension_numbers = #tpu.dot_dimension_numbers<[2], [1], [1], [2], [0, 0, 0, 1, 1, 2], [0], [0]>} : vector<4x8x8xbf16>, vector<4x8x8xbf16>, vector<4x8x8xf32> -> vector<4x8x8xf32>
    "tpu.trace_stop"() : () -> ()
    %50 = vector.shape_cast %49 : vector<4x8x8xf32> to vector<1x4x8x8xf32>
    %51 = tpu.reciprocal %46 {approx = true} : vector<1x4x8x1xf32> -> vector<1x4x8x1xf32>
    %52 = vector.broadcast %51 : vector<1x4x8x1xf32> to vector<1x4x8x8xf32>
    %53 = arith.mulf %50, %52 : vector<1x4x8x8xf32>
    %54 = tpu.transpose %53, [0, 2, 1, 3] : vector<1x4x8x8xf32> -> vector<1x8x4x8xf32>
    %55 = vector.shape_cast %54 : vector<1x8x4x8xf32> to vector<1x8x32xf32>
    %c0_29 = arith.constant 0 : index
    %c0_30 = arith.constant 0 : index
    %c0_31 = arith.constant 0 : index
    %56 = vector.load %arg11[%c0_29, %c0_30, %c0_31] : memref<1x8x32xf32, #tpu.memory_space<vmem>>, vector<1x8x32xf32>
    tpu.vector_store %arg11[%c0_29, %c0_30, %c0_31], %55 {strides = array<i32>} : memref<1x8x32xf32, #tpu.memory_space<vmem>>, vector<1x8x32xf32>,
    return
  }
  func.func @transform_0(%arg0: i32) -> (i32, i32, i32) {
    %c0_i32 = arith.constant 0 : i32
    %c0_i32_0 = arith.constant 0 : i32
    %c0_i32_1 = arith.constant 0 : i32
    return %arg0, %c0_i32, %c0_i32_0 : i32, i32, i32
  }
  func.func @transform_1(%arg0: i32) -> (i32, i32, i32) {
    %c0_i32 = arith.constant 0 : i32
    %c0_i32_0 = arith.constant 0 : i32
    %c0_i32_1 = arith.constant 0 : i32
    return %arg0, %c0_i32, %c0_i32_0 : i32, i32, i32
  }
  func.func @transform_2(%arg0: i32) -> (i32, i32, i32) {
    %c0_i32 = arith.constant 0 : i32
    %c0_i32_0 = arith.constant 0 : i32
    %c0_i32_1 = arith.constant 0 : i32
    return %arg0, %c0_i32, %c0_i32_0 : i32, i32, i32
  }
  func.func @transform_3(%arg0: i32) -> (i32, i32) {
    %c0_i32 = arith.constant 0 : i32
    %c0_i32_0 = arith.constant 0 : i32
    %c0_i32_1 = arith.constant 0 : i32
    return %c0_i32, %c0_i32_0 : i32, i32
  }
  func.func @transform_4(%arg0: i32) -> (i32, i32) {
    %c0_i32 = arith.constant 0 : i32
    %c0_i32_0 = arith.constant 0 : i32
    %c0_i32_1 = arith.constant 0 : i32
    return %c0_i32, %c0_i32_0 : i32, i32
  }
  func.func @transform_5(%arg0: i32) -> (i32, i32) {
    %c0_i32 = arith.constant 0 : i32
    %c0_i32_0 = arith.constant 0 : i32
    %c0_i32_1 = arith.constant 0 : i32
    return %c0_i32, %c0_i32_0 : i32, i32
  }
  func.func @transform_6(%arg0: i32) -> (i32, i32) {
    %c0_i32 = arith.constant 0 : i32
    %c0_i32_0 = arith.constant 0 : i32
    %c0_i32_1 = arith.constant 0 : i32
    return %c0_i32, %c0_i32_0 : i32, i32
  }
  func.func @transform_7(%arg0: i32) -> (i32, i32) {
    %c0_i32 = arith.constant 0 : i32
    %c0_i32_0 = arith.constant 0 : i32
    %c0_i32_1 = arith.constant 0 : i32
    return %c0_i32, %c0_i32_0 : i32, i32
  }
  func.func @transform_8(%arg0: i32) -> (i32, i32) {
    %c0_i32 = arith.constant 0 : i32
    %c0_i32_0 = arith.constant 0 : i32
    %c0_i32_1 = arith.constant 0 : i32
    return %c0_i32, %c0_i32_0 : i32, i32
  }
  func.func @transform_9(%arg0: i32) -> (i32, i32, i32) {
    %c0_i32 = arith.constant 0 : i32
    %c0_i32_0 = arith.constant 0 : i32
    %c0_i32_1 = arith.constant 0 : i32
    return %arg0, %c0_i32, %c0_i32_0 : i32, i32, i32
  }
  func.func @transform_10(%arg0: i32) -> (i32, i32, i32) {
    %c0_i32 = arith.constant 0 : i32
    %c0_i32_0 = arith.constant 0 : i32
    %c0_i32_1 = arith.constant 0 : i32
    return %arg0, %c0_i32, %c0_i32_0 : i32, i32, i32
  }
}

</mosaic_0001>

<llo_original>
// kernel: tpu_custom_call.1
$region0: #{tpu_custom_call.1}
  #allocation0 [shape = 'u32[]', space=smem, size = 0x4, offset = 0x4, fixed_abs, tag = 'smem constant byte address 0x4 - core index']
  #allocation1 [shape = 'u32[144,128]{1,0:T(1,128)}', space=vmem, size = 0x12000, scoped, tag = 'internal scratch']
  %s0 = inlined_call_operand.hbm [shape: f32[2,8,32], index: 0, kind: input, shape index: {}]
  %s1 = inlined_call_operand.hbm [shape: f32[2,8,32], index: 1, kind: input, shape index: {}]
  %s2 = inlined_call_operand.hbm [shape: f32[2,8,32], index: 2, kind: input, shape index: {}]
  %s3 = inlined_call_operand.hbm [shape: f32[32,32], index: 3, kind: input, shape index: {}]
  %s4 = inlined_call_operand.hbm [shape: f32[32,32], index: 4, kind: input, shape index: {}]
  %s5 = inlined_call_operand.hbm [shape: f32[32,32], index: 5, kind: input, shape index: {}]
  %s6 = inlined_call_operand.vmem [shape: f32[1,32], index: 6, kind: input, shape index: {}]
  %s7 = inlined_call_operand.vmem [shape: f32[1,32], index: 7, kind: input, shape index: {}]
  %s8 = inlined_call_operand.vmem [shape: f32[1,32], index: 8, kind: input, shape index: {}]
  %s9 = inlined_call_operand.vmem [shape: bf16[2,8,8], index: 9, kind: input, shape index: {}]
  %s10 = inlined_call_operand.hbm [shape: f32[2,8,32], index: 10, kind: output, shape index: {}]
  %s11 = sld [smem:[#allocation0]]
  $region97: #{tpu_custom_call.1} parent=0
    _
  %s13 = ssub.s32 1, %s11
  %s14 = scalar_select 0, %s13, %s11
  $region1: #{tpu_custom_call.1} parent=0
    #allocation2 [shape = 'u8[8192]{0}', space=vmem, size = 0x2000, scoped, tag = 'input window, operand 0']
    #allocation3 [shape = 's32[2]{0}', space=sflag, size = 0x8, scoped, tag = 'scoped memory for tpu_custom_call.1']
    #allocation4 [shape = 's32[2]{0}', space=sflag, size = 0x8, scoped, tag = 'scoped memory for tpu_custom_call.1']
    #allocation5 [shape = 'u8[8192]{0}', space=vmem, size = 0x2000, scoped, tag = 'input window, operand 1']
    #allocation6 [shape = 's32[2]{0}', space=sflag, size = 0x8, scoped, tag = 'scoped memory for tpu_custom_call.1']
    #allocation7 [shape = 'u8[8192]{0}', space=vmem, size = 0x2000, scoped, tag = 'input window, operand 2']
    #allocation8 [shape = 'u8[16384]{0}', space=vmem, size = 0x4000, scoped, tag = 'input window, operand 3, single buffered']
    #allocation9 [shape = 's32[1]{0}', space=sflag, size = 0x4, scoped, tag = 'scoped memory for tpu_custom_call.1']
    #allocation10 [shape = 'u8[16384]{0}', space=vmem, size = 0x4000, scoped, tag = 'input window, operand 4, single buffered']
    #allocation11 [shape = 'u8[16384]{0}', space=vmem, size = 0x4000, scoped, tag = 'input window, operand 5, single buffered']
    #allocation12 [shape = 's32[1]{0}', space=sflag, size = 0x4, scoped, tag = 'scoped memory for tpu_custom_call.1']
    #allocation13 [shape = 'u8[8192]{0}', space=vmem, size = 0x2000, scoped, tag = 'output window, operand 0']
    %15 = vsyncpa [#allocation3], 0
    %s16 = scalar_lea.sflag [#allocation3], 1
    %17 = vsyncpa %s16, 0
    %18 = vsyncpa [#allocation6], 0
    %s19 = scalar_lea.sflag [#allocation6], 1
    %20 = vsyncpa %s19, 0
    %21 = vsyncpa [#allocation9], 0
    %22 = vsyncpa [#allocation12], 0
    %23 = vsyncpa [#allocation4], 0
    %s24 = scalar_lea.sflag [#allocation4], 1
    %25 = vsyncpa %s24, 0
    loop: start=0, step=1, limit=4
    $region2: #{tpu_custom_call.1} parent=1 // loop_pre_header
      _
    $region3: #{tpu_custom_call.1} parent=1 // loop_header
      %s27 = sphi 0, %s31
      %p28 = scmp.ge.s32.totalorder %s27, 4
      %s37 = sphi 0, %s39
      %s40 = sphi 0, %s37
      %s41 = sphi 0, %s40
      %s57 = sphi 0, %s41
      %s63 = sphi 0, %s65
      %s66 = sphi 0, %s63
      %s67 = sphi 0, %s66
      %s83 = sphi 0, %s67
      %s89 = sphi 0, %s91
      %s92 = sphi 0, %s89
      %s93 = sphi 0, %s92
      %s109 = sphi 0, %s93
      %s113 = sphi 0, %s113
      %s115 = sphi 0, %s113
      %s116 = sphi 0, %s115
      %s130 = sphi 0, %s116
      %s134 = sphi 0, %s134
      %s136 = sphi 0, %s134
      %s137 = sphi 0, %s136
      %s151 = sphi 0, %s137
      %s155 = sphi 0, %s155
      %s157 = sphi 0, %s155
      %s158 = sphi 0, %s157
      %s172 = sphi 0, %s158
      %s176 = sphi 0, %s176
      %s178 = sphi 0, %s176
      %s179 = sphi 0, %s178
      %s193 = sphi 0, %s179
      %s197 = sphi 0, %s197
      %s199 = sphi 0, %s197
      %s200 = sphi 0, %s199
      %s214 = sphi 0, %s200
      %s218 = sphi 0, %s218
      %s220 = sphi 0, %s218
      %s221 = sphi 0, %s220
      %s235 = sphi 0, %s221
      %s241 = sphi 0, %s243
      %s244 = sphi 0, %s241
      %s245 = sphi 0, %s244
      %s261 = sphi 0, %s245
      %s267 = sphi 0, %s269
      %s270 = sphi 0, %s267
      %s271 = sphi 0, %s270
      %s287 = sphi 0, %s271
    $region4: #{tpu_custom_call.1} parent=1 // loop_header_branch
      %30 = sbr.rel (%p28) target = $region8
    $region5: #{tpu_custom_call.1} parent=1 // loop_body
      %s32 = ssub.s32 %s27, 1
      %s33 = ssub.s32 %s27, 2
      %s34 = sadd.s32 %s27, 1
      %s35 = ssub.s32 %s27, %s34
      %p36 = scmp.eq.s32.totalorder %s35, 0
      %s38 = sadd.s32 %s37, 1
      %s39 = scalar_select %p36, %s37, %s38
      %p42 = pneg %p36
      %p43 = scmp.eq.s32.totalorder %s27, 1
      %p44 = por %p42, %p43
      %p45 = scmp.ne.s32.totalorder %s37, %s40
      %p46 = scmp.eq.s32.totalorder %s27, 0
      %p47 = por %p45, %p46
      %p48 = scmp.ne.s32.totalorder %s37, %s40
      %p49 = scmp.eq.s32.totalorder %s32, 1
      %p50 = por %p48, %p49
      %p51 = scmp.ne.s32.totalorder %s40, %s41
      %p52 = scmp.eq.s32.totalorder %s32, 0
      %p53 = por %p51, %p52
      %p54 = scmp.ne.s32.totalorder %s40, %s41
      %p55 = scmp.eq.s32.totalorder %s33, 1
      %p56 = por %p54, %p55
      %p58 = scmp.ne.s32.totalorder %s41, %s57
      %p59 = scmp.eq.s32.totalorder %s33, 0
      %p60 = por %p58, %p59
      %s61 = ssub.s32 %s27, %s34
      %p62 = scmp.eq.s32.totalorder %s61, 0
      %s64 = sadd.s32 %s63, 1
      %s65 = scalar_select %p62, %s63, %s64
      %p68 = pneg %p62
      %p69 = scmp.eq.s32.totalorder %s27, 1
      %p70 = por %p68, %p69
      %p71 = scmp.ne.s32.totalorder %s63, %s66
      %p72 = scmp.eq.s32.totalorder %s27, 0
      %p73 = por %p71, %p72
      %p74 = scmp.ne.s32.totalorder %s63, %s66
      %p75 = scmp.eq.s32.totalorder %s32, 1
      %p76 = por %p74, %p75
      %p77 = scmp.ne.s32.totalorder %s66, %s67
      %p78 = scmp.eq.s32.totalorder %s32, 0
      %p79 = por %p77, %p78
      %p80 = scmp.ne.s32.totalorder %s66, %s67
      %p81 = scmp.eq.s32.totalorder %s33, 1
      %p82 = por %p80, %p81
      %p84 = scmp.ne.s32.totalorder %s67, %s83
      %p85 = scmp.eq.s32.totalorder %s33, 0
      %p86 = por %p84, %p85
      %s87 = ssub.s32 %s27, %s34
      %p88 = scmp.eq.s32.totalorder %s87, 0
      %s90 = sadd.s32 %s89, 1
      %s91 = scalar_select %p88, %s89, %s90
      %p94 = pneg %p88
      %p95 = scmp.eq.s32.totalorder %s27, 1
      %p96 = por %p94, %p95
      %p97 = scmp.ne.s32.totalorder %s89, %s92
      %p98 = scmp.eq.s32.totalorder %s27, 0
      %p99 = por %p97, %p98
      %p100 = scmp.ne.s32.totalorder %s89, %s92
      %p101 = scmp.eq.s32.totalorder %s32, 1
      %p102 = por %p100, %p101
      %p103 = scmp.ne.s32.totalorder %s92, %s93
      %p104 = scmp.eq.s32.totalorder %s32, 0
      %p105 = por %p103, %p104
      %p106 = scmp.ne.s32.totalorder %s92, %s93
      %p107 = scmp.eq.s32.totalorder %s33, 1
      %p108 = por %p106, %p107
      %p110 = scmp.ne.s32.totalorder %s93, %s109
      %p111 = scmp.eq.s32.totalorder %s33, 0
      %p112 = por %p110, %p111
      %s114 = sadd.s32 %s113, 1
      %p117 = scmp.eq.s32.totalorder %s27, 1
      %p118 = scmp.ne.s32.totalorder %s113, %s115
      %p119 = scmp.eq.s32.totalorder %s27, 0
      %p120 = por %p118, %p119
      %p121 = scmp.ne.s32.totalorder %s113, %s115
      %p122 = scmp.eq.s32.totalorder %s32, 1
      %p123 = por %p121, %p122
      %p124 = scmp.ne.s32.totalorder %s115, %s116
      %p125 = scmp.eq.s32.totalorder %s32, 0
      %p126 = por %p124, %p125
      %p127 = scmp.ne.s32.totalorder %s115, %s116
      %p128 = scmp.eq.s32.totalorder %s33, 1
      %p129 = por %p127, %p128
      %p131 = scmp.ne.s32.totalorder %s116, %s130
      %p132 = scmp.eq.s32.totalorder %s33, 0
      %p133 = por %p131, %p132
      %s135 = sadd.s32 %s134, 1
      %p138 = scmp.eq.s32.totalorder %s27, 1
      %p139 = scmp.ne.s32.totalorder %s134, %s136
      %p140 = scmp.eq.s32.totalorder %s27, 0
      %p141 = por %p139, %p140
      %p142 = scmp.ne.s32.totalorder %s134, %s136
      %p143 = scmp.eq.s32.totalorder %s32, 1
      %p144 = por %p142, %p143
      %p145 = scmp.ne.s32.totalorder %s136, %s137
      %p146 = scmp.eq.s32.totalorder %s32, 0
      %p147 = por %p145, %p146
      %p148 = scmp.ne.s32.totalorder %s136, %s137
      %p149 = scmp.eq.s32.totalorder %s33, 1
      %p150 = por %p148, %p149
      %p152 = scmp.ne.s32.totalorder %s137, %s151
      %p153 = scmp.eq.s32.totalorder %s33, 0
      %p154 = por %p152, %p153
      %s156 = sadd.s32 %s155, 1
      %p159 = scmp.eq.s32.totalorder %s27, 1
      %p160 = scmp.ne.s32.totalorder %s155, %s157
      %p161 = scmp.eq.s32.totalorder %s27, 0
      %p162 = por %p160, %p161
      %p163 = scmp.ne.s32.totalorder %s155, %s157
      %p164 = scmp.eq.s32.totalorder %s32, 1
      %p165 = por %p163, %p164
      %p166 = scmp.ne.s32.totalorder %s157, %s158
      %p167 = scmp.eq.s32.totalorder %s32, 0
      %p168 = por %p166, %p167
      %p169 = scmp.ne.s32.totalorder %s157, %s158
      %p170 = scmp.eq.s32.totalorder %s33, 1
      %p171 = por %p169, %p170
      %p173 = scmp.ne.s32.totalorder %s158, %s172
      %p174 = scmp.eq.s32.totalorder %s33, 0
      %p175 = por %p173, %p174
      %s177 = sadd.s32 %s176, 1
      %p180 = scmp.eq.s32.totalorder %s27, 1
      %p181 = scmp.ne.s32.totalorder %s176, %s178
      %p182 = scmp.eq.s32.totalorder %s27, 0
      %p183 = por %p181, %p182
      %p184 = scmp.ne.s32.totalorder %s176, %s178
      %p185 = scmp.eq.s32.totalorder %s32, 1
      %p186 = por %p184, %p185
      %p187 = scmp.ne.s32.totalorder %s178, %s179
      %p188 = scmp.eq.s32.totalorder %s32, 0
      %p189 = por %p187, %p188
      %p190 = scmp.ne.s32.totalorder %s178, %s179
      %p191 = scmp.eq.s32.totalorder %s33, 1
      %p192 = por %p190, %p191
      %p194 = scmp.ne.s32.totalorder %s179, %s193
      %p195 = scmp.eq.s32.totalorder %s33, 0
      %p196 = por %p194, %p195
      %s198 = sadd.s32 %s197, 1
      %p201 = scmp.eq.s32.totalorder %s27, 1
      %p202 = scmp.ne.s32.totalorder %s197, %s199
      %p203 = scmp.eq.s32.totalorder %s27, 0
      %p204 = por %p202, %p203
      %p205 = scmp.ne.s32.totalorder %s197, %s199
      %p206 = scmp.eq.s32.totalorder %s32, 1
      %p207 = por %p205, %p206
      %p208 = scmp.ne.s32.totalorder %s199, %s200
      %p209 = scmp.eq.s32.totalorder %s32, 0
      %p210 = por %p208, %p209
      %p211 = scmp.ne.s32.totalorder %s199, %s200
      %p212 = scmp.eq.s32.totalorder %s33, 1
      %p213 = por %p211, %p212
      %p215 = scmp.ne.s32.totalorder %s200, %s214
      %p216 = scmp.eq.s32.totalorder %s33, 0
      %p217 = por %p215, %p216
      %s219 = sadd.s32 %s218, 1
      %p222 = scmp.eq.s32.totalorder %s27, 1
      %p223 = scmp.ne.s32.totalorder %s218, %s220
      %p224 = scmp.eq.s32.totalorder %s27, 0
      %p225 = por %p223, %p224
      %p226 = scmp.ne.s32.totalorder %s218, %s220
      %p227 = scmp.eq.s32.totalorder %s32, 1
      %p228 = por %p226, %p227
      %p229 = scmp.ne.s32.totalorder %s220, %s221
      %p230 = scmp.eq.s32.totalorder %s32, 0
      %p231 = por %p229, %p230
      %p232 = scmp.ne.s32.totalorder %s220, %s221
      %p233 = scmp.eq.s32.totalorder %s33, 1
      %p234 = por %p232, %p233
      %p236 = scmp.ne.s32.totalorder %s221, %s235
      %p237 = scmp.eq.s32.totalorder %s33, 0
      %p238 = por %p236, %p237
      %s239 = ssub.s32 %s27, %s34
      %p240 = scmp.eq.s32.totalorder %s239, 0
      %s242 = sadd.s32 %s241, 1
      %s243 = scalar_select %p240, %s241, %s242
      %p246 = pneg %p240
      %p247 = scmp.eq.s32.totalorder %s27, 1
      %p248 = por %p246, %p247
      %p249 = scmp.ne.s32.totalorder %s241, %s244
      %p250 = scmp.eq.s32.totalorder %s27, 0
      %p251 = por %p249, %p250
      %p252 = scmp.ne.s32.totalorder %s241, %s244
      %p253 = scmp.eq.s32.totalorder %s32, 1
      %p254 = por %p252, %p253
      %p255 = scmp.ne.s32.totalorder %s244, %s245
      %p256 = scmp.eq.s32.totalorder %s32, 0
      %p257 = por %p255, %p256
      %p258 = scmp.ne.s32.totalorder %s244, %s245
      %p259 = scmp.eq.s32.totalorder %s33, 1
      %p260 = por %p258, %p259
      %p262 = scmp.ne.s32.totalorder %s245, %s261
      %p263 = scmp.eq.s32.totalorder %s33, 0
      %p264 = por %p262, %p263
      %s265 = ssub.s32 %s27, %s34
      %p266 = scmp.eq.s32.totalorder %s265, 0
      %s268 = sadd.s32 %s267, 1
      %s269 = scalar_select %p266, %s267, %s268
      %p272 = pneg %p266
      %p273 = scmp.eq.s32.totalorder %s27, 1
      %p274 = por %p272, %p273
      %p275 = scmp.ne.s32.totalorder %s267, %s270
      %p276 = scmp.eq.s32.totalorder %s27, 0
      %p277 = por %p275, %p276
      %p278 = scmp.ne.s32.totalorder %s267, %s270
      %p279 = scmp.eq.s32.totalorder %s32, 1
      %p280 = por %p278, %p279
      %p281 = scmp.ne.s32.totalorder %s270, %s271
      %p282 = scmp.eq.s32.totalorder %s32, 0
      %p283 = por %p281, %p282
      %p284 = scmp.ne.s32.totalorder %s270, %s271
      %p285 = scmp.eq.s32.totalorder %s33, 1
      %p286 = por %p284, %p285
      %p288 = scmp.ne.s32.totalorder %s271, %s287
      %p289 = scmp.eq.s32.totalorder %s33, 0
      %p290 = por %p288, %p289
      %p291 = scmp.le.s32.totalorder 1, %s27
      %p292 = scmp.lt.s32.totalorder %s27, 3
      %p293 = pnand %p291, %p292
      %p294 = pneg %p293
      // Predicated region
      $region9: #{tpu_custom_call.1} parent=5 // pred_check
        _
      $region10: #{tpu_custom_call.1} parent=5 // pred_check_branch
        %296 = sbr.rel (%p293) target = $region12
      $region11: #{tpu_custom_call.1} parent=5 // pred_region
        %s297 = ssub.s32 %s27, 1
        // Predicated region
        $region13: #{tpu_custom_call.1} parent=11 // pred_check
          %p298 = pneg %p126
        $region14: #{tpu_custom_call.1} parent=11 // pred_check_branch
          %300 = sbr.rel (%p298) target = $region16
        $region15: #{tpu_custom_call.1} parent=11 // pred_region
          %s302 = ssub.s32 512, 512
          %303 = vsyncadd [#allocation9], %s302
          %s304 = sshll.u32 [#allocation8], 4
          %s305 = int_to_ptr.vmem [resolvable:$true] %s304
          %310 = dma.hbm_to_vmem [thread:$0]  %s3, 512, %s305, [#allocation9], 128, 128, 8
        $region16: #{tpu_custom_call.1} parent=11 // pred_fallthru
          _
        // Predicated region
        $region17: #{tpu_custom_call.1} parent=11 // pred_check
          %p311 = pneg %p147
        $region18: #{tpu_custom_call.1} parent=11 // pred_check_branch
          %313 = sbr.rel (%p311) target = $region20
        $region19: #{tpu_custom_call.1} parent=11 // pred_region
          %s315 = ssub.s32 512, 512
          %316 = vsyncadd [#allocation9], %s315
          %s317 = sshll.u32 [#allocation10], 4
          %s318 = int_to_ptr.vmem [resolvable:$true] %s317
          %323 = dma.hbm_to_vmem [thread:$0]  %s4, 512, %s318, [#allocation9], 128, 128, 8
        $region20: #{tpu_custom_call.1} parent=11 // pred_fallthru
          _
        // Predicated region
        $region21: #{tpu_custom_call.1} parent=11 // pred_check
          %p324 = pneg %p168
        $region22: #{tpu_custom_call.1} parent=11 // pred_check_branch
          %326 = sbr.rel (%p324) target = $region24
        $region23: #{tpu_custom_call.1} parent=11 // pred_region
          %s328 = ssub.s32 512, 512
          %329 = vsyncadd [#allocation12], %s328
          %s330 = sshll.u32 [#allocation11], 4
          %s331 = int_to_ptr.vmem [resolvable:$true] %s330
          %336 = dma.hbm_to_vmem [thread:$0]  %s5, 512, %s331, [#allocation12], 128, 128, 8
        $region24: #{tpu_custom_call.1} parent=11 // pred_fallthru
          _
        // Predicated region
        $region25: #{tpu_custom_call.1} parent=11 // pred_check
          %p337 = pneg %p189
        $region26: #{tpu_custom_call.1} parent=11 // pred_check_branch
          %339 = sbr.rel (%p337) target = $region28
        $region27: #{tpu_custom_call.1} parent=11 // pred_region
          _
        $region28: #{tpu_custom_call.1} parent=11 // pred_fallthru
          _
        // Predicated region
        $region29: #{tpu_custom_call.1} parent=11 // pred_check
          %p340 = pneg %p210
        $region30: #{tpu_custom_call.1} parent=11 // pred_check_branch
          %342 = sbr.rel (%p340) target = $region32
        $region31: #{tpu_custom_call.1} parent=11 // pred_region
          _
        $region32: #{tpu_custom_call.1} parent=11 // pred_fallthru
          _
        // Predicated region
        $region33: #{tpu_custom_call.1} parent=11 // pred_check
          %p343 = pneg %p231
        $region34: #{tpu_custom_call.1} parent=11 // pred_check_branch
          %345 = sbr.rel (%p343) target = $region36
        $region35: #{tpu_custom_call.1} parent=11 // pred_region
          _
        $region36: #{tpu_custom_call.1} parent=11 // pred_fallthru
          _
      $region12: #{tpu_custom_call.1} parent=5 // pred_fallthru
        _
      %p346 = scmp.lt.s32.totalorder %s27, 2
      // Predicated region
      $region37: #{tpu_custom_call.1} parent=5 // pred_check
        %p347 = pneg %p346
      $region38: #{tpu_custom_call.1} parent=5 // pred_check_branch
        %349 = sbr.rel (%p347) target = $region40
      $region39: #{tpu_custom_call.1} parent=5 // pred_region
        // Predicated region
        $region41: #{tpu_custom_call.1} parent=39 // pred_check
          %p350 = pneg %p47
        $region42: #{tpu_custom_call.1} parent=39 // pred_check_branch
          %352 = sbr.rel (%p350) target = $region44
        $region43: #{tpu_custom_call.1} parent=39 // pred_region
          %s353 = sand.u32 %s37, 1
          %s354 = scalar_lea.sflag [#allocation3], %s353
          %s355 = sand.u32 %s37, 1
          %s356 = smul.addr %s355, 8
          %s357 = scalar_lea.vmem [#allocation2], %s356
          %s359 = ssub.s32 128, 128
          %360 = vsyncadd %s354, %s359
          %s361 = smul.addr %s27, 128
          %s362 = scalar_lea.hbm %s0, %s361
          %s364 = sshll.u32 %s357, 4
          %s365 = int_to_ptr.vmem [resolvable:$true] %s364
          %367 = dma.hbm_to_vmem [thread:$0]  %s362, 128, %s365, %s354
        $region44: #{tpu_custom_call.1} parent=39 // pred_fallthru
          _
        // Predicated region
        $region45: #{tpu_custom_call.1} parent=39 // pred_check
          %p368 = pneg %p73
        $region46: #{tpu_custom_call.1} parent=39 // pred_check_branch
          %370 = sbr.rel (%p368) target = $region48
        $region47: #{tpu_custom_call.1} parent=39 // pred_region
          %s371 = sand.u32 %s27, 1
          %s372 = scalar_lea.sflag [#allocation6], %s371
          %s373 = sand.u32 %s63, 1
          %s374 = smul.addr %s373, 8
          %s375 = scalar_lea.vmem [#allocation5], %s374
          %s377 = ssub.s32 128, 128
          %378 = vsyncadd %s372, %s377
          %s379 = smul.addr %s27, 128
          %s380 = scalar_lea.hbm %s1, %s379
          %s382 = sshll.u32 %s375, 4
          %s383 = int_to_ptr.vmem [resolvable:$true] %s382
          %385 = dma.hbm_to_vmem [thread:$0]  %s380, 128, %s383, %s372
        $region48: #{tpu_custom_call.1} parent=39 // pred_fallthru
          _
        // Predicated region
        $region49: #{tpu_custom_call.1} parent=39 // pred_check
          %p386 = pneg %p99
        $region50: #{tpu_custom_call.1} parent=39 // pred_check_branch
          %388 = sbr.rel (%p386) target = $region52
        $region51: #{tpu_custom_call.1} parent=39 // pred_region
          %s389 = sand.u32 %s27, 1
          %s390 = scalar_lea.sflag [#allocation6], %s389
          %s391 = sand.u32 %s89, 1
          %s392 = smul.addr %s391, 8
          %s393 = scalar_lea.vmem [#allocation7], %s392
          %s395 = ssub.s32 128, 128
          %396 = vsyncadd %s390, %s395
          %s397 = smul.addr %s27, 128
          %s398 = scalar_lea.hbm %s2, %s397
          %s400 = sshll.u32 %s393, 4
          %s401 = int_to_ptr.vmem [resolvable:$true] %s400
          %403 = dma.hbm_to_vmem [thread:$0]  %s398, 128, %s401, %s390
        $region52: #{tpu_custom_call.1} parent=39 // pred_fallthru
          _
        // Predicated region
        $region53: #{tpu_custom_call.1} parent=39 // pred_check
          %p404 = pneg %p251
        $region54: #{tpu_custom_call.1} parent=39 // pred_check_branch
          %406 = sbr.rel (%p404) target = $region56
        $region55: #{tpu_custom_call.1} parent=39 // pred_region
          %p407 = scmp.lt.s32.totalorder %s27, 1
          %s408 = scalar_select %p407, %s27, 1
          %s409 = smul.addr %s408, 4
          %s410 = scalar_lea.vmem %s9, %s409
        $region56: #{tpu_custom_call.1} parent=39 // pred_fallthru
          _
      $region40: #{tpu_custom_call.1} parent=5 // pred_fallthru
        _
      %p411 = scmp.le.s32.totalorder 1, %s27
      %p412 = scmp.lt.s32.totalorder %s27, 3
      %p413 = pnand %p411, %p412
      %p414 = pneg %p413
      // Predicated region
      $region57: #{tpu_custom_call.1} parent=5 // pred_check
        _
      $region58: #{tpu_custom_call.1} parent=5 // pred_check_branch
        %416 = sbr.rel (%p413) target = $region60
      $region59: #{tpu_custom_call.1} parent=5 // pred_region
        %s417 = ssub.s32 %s27, 1
        %s418 = sand.u32 %s40, 1
        %s419 = scalar_lea.sflag [#allocation3], %s418
        %s420 = sand.u32 %s40, 1
        %s421 = smul.addr %s420, 8
        %s422 = scalar_lea.vmem [#allocation2], %s421
        // Predicated region
        $region61: #{tpu_custom_call.1} parent=59 // pred_check
          %p423 = pneg %p53
        $region62: #{tpu_custom_call.1} parent=59 // pred_check_branch
          %425 = sbr.rel (%p423) target = $region64
        $region63: #{tpu_custom_call.1} parent=59 // pred_region
          %426 = dma.done %s419, 128
        $region64: #{tpu_custom_call.1} parent=59 // pred_fallthru
          _
        %s427 = sand.u32 %s32, 1
        %s428 = scalar_lea.sflag [#allocation6], %s427
        %s429 = sand.u32 %s66, 1
        %s430 = smul.addr %s429, 8
        %s431 = scalar_lea.vmem [#allocation5], %s430
        // Predicated region
        $region65: #{tpu_custom_call.1} parent=59 // pred_check
          %p432 = pneg %p79
        $region66: #{tpu_custom_call.1} parent=59 // pred_check_branch
          %434 = sbr.rel (%p432) target = $region68
        $region67: #{tpu_custom_call.1} parent=59 // pred_region
          %435 = dma.done %s428, 128
        $region68: #{tpu_custom_call.1} parent=59 // pred_fallthru
          _
        %s436 = sand.u32 %s32, 1
        %s437 = scalar_lea.sflag [#allocation6], %s436
        %s438 = sand.u32 %s92, 1
        %s439 = smul.addr %s438, 8
        %s440 = scalar_lea.vmem [#allocation7], %s439
        // Predicated region
        $region69: #{tpu_custom_call.1} parent=59 // pred_check
          %p441 = pneg %p105
        $region70: #{tpu_custom_call.1} parent=59 // pred_check_branch
          %443 = sbr.rel (%p441) target = $region72
        $region71: #{tpu_custom_call.1} parent=59 // pred_region
          %444 = dma.done %s437, 128
        $region72: #{tpu_custom_call.1} parent=59 // pred_fallthru
          _
        // Predicated region
        $region73: #{tpu_custom_call.1} parent=59 // pred_check
          %p445 = pneg %p126
        $region74: #{tpu_custom_call.1} parent=59 // pred_check_branch
          %447 = sbr.rel (%p445) target = $region76
        $region75: #{tpu_custom_call.1} parent=59 // pred_region
          %448 = dma.done [#allocation9], 512
        $region76: #{tpu_custom_call.1} parent=59 // pred_fallthru
          _
        // Predicated region
        $region77: #{tpu_custom_call.1} parent=59 // pred_check
          %p449 = pneg %p147
        $region78: #{tpu_custom_call.1} parent=59 // pred_check_branch
          %451 = sbr.rel (%p449) target = $region80
        $region79: #{tpu_custom_call.1} parent=59 // pred_region
          %452 = dma.done [#allocation9], 512
        $region80: #{tpu_custom_call.1} parent=59 // pred_fallthru
          _
        // Predicated region
        $region81: #{tpu_custom_call.1} parent=59 // pred_check
          %p453 = pneg %p168
        $region82: #{tpu_custom_call.1} parent=59 // pred_check_branch
          %455 = sbr.rel (%p453) target = $region84
        $region83: #{tpu_custom_call.1} parent=59 // pred_region
          %456 = dma.done [#allocation12], 512
        $region84: #{tpu_custom_call.1} parent=59 // pred_fallthru
          _
        %s457 = sand.u32 %s40, 1
        %s458 = scalar_lea.sflag [#allocation3], %s457
        %s459 = sand.u32 %s40, 1
        %s460 = smul.addr %s459, 8
        %s461 = scalar_lea.vmem [#allocation2], %s460
        %p462 = pneg %p53
        %p463 = pneg %p50
        %s464 = sand.u32 %s32, 1
        %s465 = scalar_lea.sflag [#allocation6], %s464
        %s466 = sand.u32 %s66, 1
        %s467 = smul.addr %s466, 8
        %s468 = scalar_lea.vmem [#allocation5], %s467
        %p469 = pneg %p79
        %p470 = pneg %p76
        %s471 = sand.u32 %s32, 1
        %s472 = scalar_lea.sflag [#allocation6], %s471
        %s473 = sand.u32 %s92, 1
        %s474 = smul.addr %s473, 8
        %s475 = scalar_lea.vmem [#allocation7], %s474
        %p476 = pneg %p105
        %p477 = pneg %p102
        %p478 = pneg %p126
        %p479 = pneg %p123
        %p480 = pneg %p147
        %p481 = pneg %p144
        %p482 = pneg %p168
        %p483 = pneg %p165
        %p484 = pneg %p189
        %p485 = pneg %p186
        %p486 = pneg %p210
        %p487 = pneg %p207
        %p488 = pneg %p231
        %p489 = pneg %p228
        %p490 = scmp.lt.s32.totalorder %s32, 1
        %s491 = scalar_select %p490, %s32, 1
        %s492 = smul.addr %s491, 4
        %s493 = scalar_lea.vmem %s9, %s492
        %p494 = pneg %p257
        %p495 = pneg %p254
        %p496 = pneg %p283
        %p497 = pneg %p280
        %s498 = sand.u32 %s270, 1
        %s499 = scalar_lea.sflag [#allocation4], %s498
        %s500 = sand.u32 %s270, 1
        %s501 = smul.addr %s500, 8
        %s502 = scalar_lea.vmem [#allocation13], %s501
        %p503 = scmp.lt.s32.totalorder %s32, 1
        %s504 = scalar_select %p503, %s32, 1
        %s505 = smul.addr %s504, 4
        %s506 = scalar_lea.vmem %s9, %s505
        %v508 = vld [vmem:[%s422] sm:$0xff]
        %v509 = vld [vmem:[#allocation8] sm:$0xff]
        %v510 = vld [vmem:[#allocation8 + $0x8] sm:$0xff]
        %v511 = vld [vmem:[#allocation8 + $0x10] sm:$0xff]
        %v512 = vld [vmem:[#allocation8 + $0x18] sm:$0xff]
        %v513 = vld [vmem:[%s6] sm:$0x1]
        %v515 = vlaneseq
        %v516 = vshrl.u32 %v515, 7
        %v517 = vsub.s32 0, %v516
        %v518 = vrot.slane %v513, %v517
        %vm520 = vcmask 261120
        %v522 = vsel %vm520, %v508, 0
        %524 = vmatprep.subr.mxu0 0.0
        %525 = vmatpush1.msra.mxu0 0.0
        %526 = vmatprep.subr.mxu0 0.0
        %527 = vmatpush1.msra.mxu0 0.0
        %528 = vmatprep.subr.mxu0 0.0
        %529 = vmatpush1.msra.mxu0 0.0
        %530 = vmatprep.subr.mxu0 0.0
        %531 = vmatpush1.msra.mxu0 0.0
        %532 = vmatprep.subr.mxu0 0.0
        %533 = vmatpush1.msra.mxu0 0.0
        %534 = vmatprep.subr.mxu0 0.0
        %535 = vmatpush1.msra.mxu0 0.0
        %536 = vmatprep.subr.mxu0 0.0
        %537 = vmatpush1.msra.mxu0 0.0
        %538 = vmatprep.subr.mxu0 0.0
        %539 = vmatpush1.msra.mxu0 0.0
        %540 = vmatprep.subr.mxu0 0.0
        %541 = vmatpush1.msra.mxu0 0.0
        %542 = vmatprep.subr.mxu0 0.0
        %543 = vmatpush1.msra.mxu0 0.0
        %544 = vmatprep.subr.mxu0 0.0
        %545 = vmatpush1.msra.mxu0 0.0
        %546 = vmatprep.subr.mxu0 0.0
        %547 = vmatpush1.msra.mxu0 0.0
        %548 = vmatprep.subr.mxu0 0.0
        %549 = vmatpush1.msra.mxu0 %v512
        %550 = vmatprep.subr.mxu0 0.0
        %551 = vmatpush1.msra.mxu0 %v511
        %552 = vmatprep.subr.mxu0 0.0
        %553 = vmatpush1.msra.mxu0 %v510
        %554 = vmatprep.subr.mxu0 0.0
        %555 = vmatpush1.msra.mxu0 %v509
        %556 = vmatprep.subr.mxu0 0.0
        %557 = vmatpush2.msra.mxu0 0.0
        %558 = vmatprep.subr.mxu0 0.0
        %559 = vmatpush2.msra.mxu0 0.0
        %560 = vmatprep.subr.mxu0 0.0
        %561 = vmatpush2.msra.mxu0 0.0
        %562 = vmatprep.subr.mxu0 0.0
        %563 = vmatpush2.msra.mxu0 0.0
        %564 = vmatprep.subr.mxu0 0.0
        %565 = vmatpush2.msra.mxu0 0.0
        %566 = vmatprep.subr.mxu0 0.0
        %567 = vmatpush2.msra.mxu0 0.0
        %568 = vmatprep.subr.mxu0 0.0
        %569 = vmatpush2.msra.mxu0 0.0
        %570 = vmatprep.subr.mxu0 0.0
        %571 = vmatpush2.msra.mxu0 0.0
        %572 = vmatprep.subr.mxu0 0.0
        %573 = vmatpush2.msra.mxu0 0.0
        %574 = vmatprep.subr.mxu0 0.0
        %575 = vmatpush2.msra.mxu0 0.0
        %576 = vmatprep.subr.mxu0 0.0
        %577 = vmatpush2.msra.mxu0 0.0
        %578 = vmatprep.subr.mxu0 0.0
        %579 = vmatpush2.msra.mxu0 0.0
        %580 = vmatprep.subr.mxu0 0.0
        %581 = vmatpush2.msra.mxu0 0.0
        %582 = vmatprep.subr.mxu0 0.0
        %583 = vmatpush2.msra.mxu0 0.0
        %584 = vmatprep.subr.mxu0 0.0
        %585 = vmatpush2.msra.mxu0 0.0
        %586 = vmatprep.subr.mxu0 0.0
        %587 = vmatpush2.msra.mxu0 0.0
        %588 = vmatprep.mubr.f32.mxu0 0.0
        %589 = vmatmul.mubr.f32.gmra.mxu0 %v522
        %v590 = vpop.f32.mrf.mxu0
        %v591 = vadd.f32 %v518, %v590
        %v592 = vpop.f32.mrf.mxu0
        %593 = vdwg.mxu0
        %v594 = vld [vmem:[%s431] sm:$0xff]
        %v595 = vld [vmem:[#allocation10] sm:$0xff]
        %v596 = vld [vmem:[#allocation10 + $0x8] sm:$0xff]
        %v597 = vld [vmem:[#allocation10 + $0x10] sm:$0xff]
        %v598 = vld [vmem:[#allocation10 + $0x18] sm:$0xff]
        %v599 = vld [vmem:[%s7] sm:$0x1]
        %v601 = vlaneseq
        %v602 = vshrl.u32 %v601, 7
        %v603 = vsub.s32 0, %v602
        %v604 = vrot.slane %v599, %v603
        %v607 = vsel %vm520, %v594, 0
        %609 = vmatprep.subr.mxu0 0.0
        %610 = vmatpush1.msra.mxu0 0.0
        %611 = vmatprep.subr.mxu0 0.0
        %612 = vmatpush1.msra.mxu0 0.0
        %613 = vmatprep.subr.mxu0 0.0
        %614 = vmatpush1.msra.mxu0 0.0
        %615 = vmatprep.subr.mxu0 0.0
        %616 = vmatpush1.msra.mxu0 0.0
        %617 = vmatprep.subr.mxu0 0.0
        %618 = vmatpush1.msra.mxu0 0.0
        %619 = vmatprep.subr.mxu0 0.0
        %620 = vmatpush1.msra.mxu0 0.0
        %621 = vmatprep.subr.mxu0 0.0
        %622 = vmatpush1.msra.mxu0 0.0
        %623 = vmatprep.subr.mxu0 0.0
        %624 = vmatpush1.msra.mxu0 0.0
        %625 = vmatprep.subr.mxu0 0.0
        %626 = vmatpush1.msra.mxu0 0.0
        %627 = vmatprep.subr.mxu0 0.0
        %628 = vmatpush1.msra.mxu0 0.0
        %629 = vmatprep.subr.mxu0 0.0
        %630 = vmatpush1.msra.mxu0 0.0
        %631 = vmatprep.subr.mxu0 0.0
        %632 = vmatpush1.msra.mxu0 0.0
        %633 = vmatprep.subr.mxu0 0.0
        %634 = vmatpush1.msra.mxu0 %v598
        %635 = vmatprep.subr.mxu0 0.0
        %636 = vmatpush1.msra.mxu0 %v597
        %637 = vmatprep.subr.mxu0 0.0
        %638 = vmatpush1.msra.mxu0 %v596
        %639 = vmatprep.subr.mxu0 0.0
        %640 = vmatpush1.msra.mxu0 %v595
        %641 = vmatprep.subr.mxu0 0.0
        %642 = vmatpush2.msra.mxu0 0.0
        %643 = vmatprep.subr.mxu0 0.0
        %644 = vmatpush2.msra.mxu0 0.0
        %645 = vmatprep.subr.mxu0 0.0
        %646 = vmatpush2.msra.mxu0 0.0
        %647 = vmatprep.subr.mxu0 0.0
        %648 = vmatpush2.msra.mxu0 0.0
        %649 = vmatprep.subr.mxu0 0.0
        %650 = vmatpush2.msra.mxu0 0.0
        %651 = vmatprep.subr.mxu0 0.0
        %652 = vmatpush2.msra.mxu0 0.0
        %653 = vmatprep.subr.mxu0 0.0
        %654 = vmatpush2.msra.mxu0 0.0
        %655 = vmatprep.subr.mxu0 0.0
        %656 = vmatpush2.msra.mxu0 0.0
        %657 = vmatprep.subr.mxu0 0.0
        %658 = vmatpush2.msra.mxu0 0.0
        %659 = vmatprep.subr.mxu0 0.0
        %660 = vmatpush2.msra.mxu0 0.0
        %661 = vmatprep.subr.mxu0 0.0
        %662 = vmatpush2.msra.mxu0 0.0
        %663 = vmatprep.subr.mxu0 0.0
        %664 = vmatpush2.msra.mxu0 0.0
        %665 = vmatprep.subr.mxu0 0.0
        %666 = vmatpush2.msra.mxu0 0.0
        %667 = vmatprep.subr.mxu0 0.0
        %668 = vmatpush2.msra.mxu0 0.0
        %669 = vmatprep.subr.mxu0 0.0
        %670 = vmatpush2.msra.mxu0 0.0
        %671 = vmatprep.subr.mxu0 0.0
        %672 = vmatpush2.msra.mxu0 0.0
        %673 = vmatprep.mubr.f32.mxu0 0.0
        %674 = vmatmul.mubr.f32.gmra.mxu0 %v607
        %v675 = vpop.f32.mrf.mxu0
        %v676 = vadd.f32 %v604, %v675
        %v677 = vpop.f32.mrf.mxu0
        %678 = vdwg.mxu0
        %v679 = vld [vmem:[%s440] sm:$0xff]
        %v680 = vld [vmem:[#allocation11] sm:$0xff]
        %v681 = vld [vmem:[#allocation11 + $0x8] sm:$0xff]
        %v682 = vld [vmem:[#allocation11 + $0x10] sm:$0xff]
        %v683 = vld [vmem:[#allocation11 + $0x18] sm:$0xff]
        %v684 = vld [vmem:[%s8] sm:$0x1]
        %v686 = vlaneseq
        %v687 = vshrl.u32 %v686, 7
        %v688 = vsub.s32 0, %v687
        %v689 = vrot.slane %v684, %v688
        %v692 = vsel %vm520, %v679, 0
        %694 = vmatprep.subr.mxu0 0.0
        %695 = vmatpush1.msra.mxu0 0.0
        %696 = vmatprep.subr.mxu0 0.0
        %697 = vmatpush1.msra.mxu0 0.0
        %698 = vmatprep.subr.mxu0 0.0
        %699 = vmatpush1.msra.mxu0 0.0
        %700 = vmatprep.subr.mxu0 0.0
        %701 = vmatpush1.msra.mxu0 0.0
        %702 = vmatprep.subr.mxu0 0.0
        %703 = vmatpush1.msra.mxu0 0.0
        %704 = vmatprep.subr.mxu0 0.0
        %705 = vmatpush1.msra.mxu0 0.0
        %706 = vmatprep.subr.mxu0 0.0
        %707 = vmatpush1.msra.mxu0 0.0
        %708 = vmatprep.subr.mxu0 0.0
        %709 = vmatpush1.msra.mxu0 0.0
        %710 = vmatprep.subr.mxu0 0.0
        %711 = vmatpush1.msra.mxu0 0.0
        %712 = vmatprep.subr.mxu0 0.0
        %713 = vmatpush1.msra.mxu0 0.0
        %714 = vmatprep.subr.mxu0 0.0
        %715 = vmatpush1.msra.mxu0 0.0
        %716 = vmatprep.subr.mxu0 0.0
        %717 = vmatpush1.msra.mxu0 0.0
        %718 = vmatprep.subr.mxu0 0.0
        %719 = vmatpush1.msra.mxu0 %v683
        %720 = vmatprep.subr.mxu0 0.0
        %721 = vmatpush1.msra.mxu0 %v682
        %722 = vmatprep.subr.mxu0 0.0
        %723 = vmatpush1.msra.mxu0 %v681
        %724 = vmatprep.subr.mxu0 0.0
        %725 = vmatpush1.msra.mxu0 %v680
        %726 = vmatprep.subr.mxu0 0.0
        %727 = vmatpush2.msra.mxu0 0.0
        %728 = vmatprep.subr.mxu0 0.0
        %729 = vmatpush2.msra.mxu0 0.0
        %730 = vmatprep.subr.mxu0 0.0
        %731 = vmatpush2.msra.mxu0 0.0
        %732 = vmatprep.subr.mxu0 0.0
        %733 = vmatpush2.msra.mxu0 0.0
        %734 = vmatprep.subr.mxu0 0.0
        %735 = vmatpush2.msra.mxu0 0.0
        %736 = vmatprep.subr.mxu0 0.0
        %737 = vmatpush2.msra.mxu0 0.0
        %738 = vmatprep.subr.mxu0 0.0
        %739 = vmatpush2.msra.mxu0 0.0
        %740 = vmatprep.subr.mxu0 0.0
        %741 = vmatpush2.msra.mxu0 0.0
        %742 = vmatprep.subr.mxu0 0.0
        %743 = vmatpush2.msra.mxu0 0.0
        %744 = vmatprep.subr.mxu0 0.0
        %745 = vmatpush2.msra.mxu0 0.0
        %746 = vmatprep.subr.mxu0 0.0
        %747 = vmatpush2.msra.mxu0 0.0
        %748 = vmatprep.subr.mxu0 0.0
        %749 = vmatpush2.msra.mxu0 0.0
        %750 = vmatprep.subr.mxu0 0.0
        %751 = vmatpush2.msra.mxu0 0.0
        %752 = vmatprep.subr.mxu0 0.0
        %753 = vmatpush2.msra.mxu0 0.0
        %754 = vmatprep.subr.mxu0 0.0
        %755 = vmatpush2.msra.mxu0 0.0
        %756 = vmatprep.subr.mxu0 0.0
        %757 = vmatpush2.msra.mxu0 0.0
        %758 = vmatprep.mubr.f32.mxu0 0.0
        %759 = vmatmul.mubr.f32.gmra.mxu0 %v692
        %v760 = vpop.f32.mrf.mxu0
        %v761 = vadd.f32 %v689, %v760
        %v762 = vpop.f32.mrf.mxu0
        %763 = vdwg.mxu0
        %765 = vrot.lane.b32.xlu0 %v591, 120
        %v766 = vpop.permute.xlu0 %765
        %768 = vrot.lane.b32.xlu0 %v591, 112
        %v769 = vpop.permute.xlu0 %768
        %771 = vrot.lane.b32.xlu0 %v591, 104
        %v772 = vpop.permute.xlu0 %771
        %v774 = vcombine.low %v591, %v769
        %v775 = vcombine.high %v591, %v769
        %v777 = vunpack.c.l.s4 1983009808
        %v778 = vunpack.c.0.s8 %v777
        %v779 = vlaneseq
        %v780 = vshrl.u32 %v779, 7
        %v781 = vsub.s32 %v778, %v780
        %v782 = vrot.slane %v774, %v781
        %v784 = vunpack.c.l.s4 1983009808
        %v785 = vunpack.c.0.s8 %v784
        %v786 = vlaneseq
        %v787 = vshrl.u32 %v786, 7
        %v788 = vsub.s32 %v785, %v787
        %v789 = vrot.slane %v775, %v788
        %v790 = vcombine.low %v766, %v772
        %v791 = vcombine.high %v766, %v772
        %v793 = vunpack.c.l.s4 1983009808
        %v794 = vunpack.c.0.s8 %v793
        %v795 = vlaneseq
        %v796 = vshrl.u32 %v795, 7
        %v797 = vsub.s32 %v794, %v796
        %v798 = vrot.slane %v790, %v797
        %v800 = vunpack.c.l.s4 1983009808
        %v801 = vunpack.c.0.s8 %v800
        %v802 = vlaneseq
        %v803 = vshrl.u32 %v802, 7
        %v804 = vsub.s32 %v801, %v803
        %v805 = vrot.slane %v791, %v804
        %v806 = vcombine.low %v782, %v798
        %v807 = vcombine.high %v782, %v798
        %v809 = vunpack.c.l.s4 1934713408
        %v810 = vunpack.c.0.s8 %v809
        %v811 = vlaneseq
        %v812 = vshrl.u32 %v811, 7
        %v813 = vsub.s32 %v810, %v812
        %v814 = vrot.slane %v806, %v813
        %v816 = vunpack.c.l.s4 1934713408
        %v817 = vunpack.c.0.s8 %v816
        %v818 = vlaneseq
        %v819 = vshrl.u32 %v818, 7
        %v820 = vsub.s32 %v817, %v819
        %v821 = vrot.slane %v807, %v820
        %v822 = vcombine.low %v789, %v805
        %v823 = vcombine.high %v789, %v805
        %v825 = vunpack.c.l.s4 1934713408
        %v826 = vunpack.c.0.s8 %v825
        %v827 = vlaneseq
        %v828 = vshrl.u32 %v827, 7
        %v829 = vsub.s32 %v826, %v828
        %v830 = vrot.slane %v822, %v829
        %v832 = vunpack.c.l.s4 1934713408
        %v833 = vunpack.c.0.s8 %v832
        %v834 = vlaneseq
        %v835 = vshrl.u32 %v834, 7
        %v836 = vsub.s32 %v833, %v835
        %v837 = vrot.slane %v823, %v836
        %v838 = vcombine.high %v814, 0.0
        %v839 = vcombine.high %v821, 0.0
        %v840 = vcombine.high %v830, 0.0
        %v841 = vcombine.high %v837, 0.0
        %v842 = vcombine.low %v814, %v821
        %v844 = vunpack.c.l.s4 1983009808
        %v845 = vunpack.c.0.s8 %v844
        %v846 = vlaneseq
        %v847 = vshrl.u32 %v846, 7
        %v848 = vsub.s32 %v845, %v847
        %v849 = vrot.slane %v842, %v848
        %v850 = vcombine.low %v838, %v839
        %v852 = vunpack.c.l.s4 1983009808
        %v853 = vunpack.c.0.s8 %v852
        %v854 = vlaneseq
        %v855 = vshrl.u32 %v854, 7
        %v856 = vsub.s32 %v853, %v855
        %v857 = vrot.slane %v850, %v856
        %v858 = vcombine.low %v830, %v837
        %v860 = vunpack.c.l.s4 1983009808
        %v861 = vunpack.c.0.s8 %v860
        %v862 = vlaneseq
        %v863 = vshrl.u32 %v862, 7
        %v864 = vsub.s32 %v861, %v863
        %v865 = vrot.slane %v858, %v864
        %v866 = vcombine.low %v840, %v841
        %v868 = vunpack.c.l.s4 1983009808
        %v869 = vunpack.c.0.s8 %v868
        %v870 = vlaneseq
        %v871 = vshrl.u32 %v870, 7
        %v872 = vsub.s32 %v869, %v871
        %v873 = vrot.slane %v866, %v872
        %v874 = vcombine.low %v849, %v857
        %v875 = vcombine.high %v849, %v857
        %v877 = vunpack.c.l.s4 1934713408
        %v878 = vunpack.c.0.s8 %v877
        %v879 = vlaneseq
        %v880 = vshrl.u32 %v879, 7
        %v881 = vsub.s32 %v878, %v880
        %v882 = vrot.slane %v874, %v881
        %v884 = vunpack.c.l.s4 1934713408
        %v885 = vunpack.c.0.s8 %v884
        %v886 = vlaneseq
        %v887 = vshrl.u32 %v886, 7
        %v888 = vsub.s32 %v885, %v887
        %v889 = vrot.slane %v875, %v888
        %v890 = vcombine.low %v865, %v873
        %v891 = vcombine.high %v865, %v873
        %v893 = vunpack.c.l.s4 1934713408
        %v894 = vunpack.c.0.s8 %v893
        %v895 = vlaneseq
        %v896 = vshrl.u32 %v895, 7
        %v897 = vsub.s32 %v894, %v896
        %v898 = vrot.slane %v890, %v897
        %v900 = vunpack.c.l.s4 1934713408
        %v901 = vunpack.c.0.s8 %v900
        %v902 = vlaneseq
        %v903 = vshrl.u32 %v902, 7
        %v904 = vsub.s32 %v901, %v903
        %v905 = vrot.slane %v891, %v904
        %v906 = vcombine.low %v882, %v898
        %v907 = vcombine.high %v882, %v898
        %v908 = vcombine.low %v889, %v905
        %v909 = vcombine.high %v889, %v905
        %v910 = vpack.c.bf16 %v906, %v906
        %v911 = vpack.c.bf16 %v907, %v907
        %v912 = vpack.c.bf16 %v908, %v908
        %v913 = vpack.c.bf16 %v909, %v909
        %915 = vrot.lane.b32.xlu0 %v676, 120
        %v916 = vpop.permute.xlu0 %915
        %918 = vrot.lane.b32.xlu0 %v676, 112
        %v919 = vpop.permute.xlu0 %918
        %921 = vrot.lane.b32.xlu0 %v676, 104
        %v922 = vpop.permute.xlu0 %921
        %v924 = vcombine.low %v676, %v919
        %v925 = vcombine.high %v676, %v919
        %v927 = vunpack.c.l.s4 1983009808
        %v928 = vunpack.c.0.s8 %v927
        %v929 = vlaneseq
        %v930 = vshrl.u32 %v929, 7
        %v931 = vsub.s32 %v928, %v930
        %v932 = vrot.slane %v924, %v931
        %v934 = vunpack.c.l.s4 1983009808
        %v935 = vunpack.c.0.s8 %v934
        %v936 = vlaneseq
        %v937 = vshrl.u32 %v936, 7
        %v938 = vsub.s32 %v935, %v937
        %v939 = vrot.slane %v925, %v938
        %v940 = vcombine.low %v916, %v922
        %v941 = vcombine.high %v916, %v922
        %v943 = vunpack.c.l.s4 1983009808
        %v944 = vunpack.c.0.s8 %v943
        %v945 = vlaneseq
        %v946 = vshrl.u32 %v945, 7
        %v947 = vsub.s32 %v944, %v946
        %v948 = vrot.slane %v940, %v947
        %v950 = vunpack.c.l.s4 1983009808
        %v951 = vunpack.c.0.s8 %v950
        %v952 = vlaneseq
        %v953 = vshrl.u32 %v952, 7
        %v954 = vsub.s32 %v951, %v953
        %v955 = vrot.slane %v941, %v954
        %v956 = vcombine.low %v932, %v948
        %v957 = vcombine.high %v932, %v948
        %v959 = vunpack.c.l.s4 1934713408
        %v960 = vunpack.c.0.s8 %v959
        %v961 = vlaneseq
        %v962 = vshrl.u32 %v961, 7
        %v963 = vsub.s32 %v960, %v962
        %v964 = vrot.slane %v956, %v963
        %v966 = vunpack.c.l.s4 1934713408
        %v967 = vunpack.c.0.s8 %v966
        %v968 = vlaneseq
        %v969 = vshrl.u32 %v968, 7
        %v970 = vsub.s32 %v967, %v969
        %v971 = vrot.slane %v957, %v970
        %v972 = vcombine.low %v939, %v955
        %v973 = vcombine.high %v939, %v955
        %v975 = vunpack.c.l.s4 1934713408
        %v976 = vunpack.c.0.s8 %v975
        %v977 = vlaneseq
        %v978 = vshrl.u32 %v977, 7
        %v979 = vsub.s32 %v976, %v978
        %v980 = vrot.slane %v972, %v979
        %v982 = vunpack.c.l.s4 1934713408
        %v983 = vunpack.c.0.s8 %v982
        %v984 = vlaneseq
        %v985 = vshrl.u32 %v984, 7
        %v986 = vsub.s32 %v983, %v985
        %v987 = vrot.slane %v973, %v986
        %v988 = vcombine.high %v964, 0.0
        %v989 = vcombine.high %v971, 0.0
        %v990 = vcombine.high %v980, 0.0
        %v991 = vcombine.high %v987, 0.0
        %v992 = vcombine.low %v964, %v971
        %v994 = vunpack.c.l.s4 1983009808
        %v995 = vunpack.c.0.s8 %v994
        %v996 = vlaneseq
        %v997 = vshrl.u32 %v996, 7
        %v998 = vsub.s32 %v995, %v997
        %v999 = vrot.slane %v992, %v998
        %v1000 = vcombine.low %v988, %v989
        %v1002 = vunpack.c.l.s4 1983009808
        %v1003 = vunpack.c.0.s8 %v1002
        %v1004 = vlaneseq
        %v1005 = vshrl.u32 %v1004, 7
        %v1006 = vsub.s32 %v1003, %v1005
        %v1007 = vrot.slane %v1000, %v1006
        %v1008 = vcombine.low %v980, %v987
        %v1010 = vunpack.c.l.s4 1983009808
        %v1011 = vunpack.c.0.s8 %v1010
        %v1012 = vlaneseq
        %v1013 = vshrl.u32 %v1012, 7
        %v1014 = vsub.s32 %v1011, %v1013
        %v1015 = vrot.slane %v1008, %v1014
        %v1016 = vcombine.low %v990, %v991
        %v1018 = vunpack.c.l.s4 1983009808
        %v1019 = vunpack.c.0.s8 %v1018
        %v1020 = vlaneseq
        %v1021 = vshrl.u32 %v1020, 7
        %v1022 = vsub.s32 %v1019, %v1021
        %v1023 = vrot.slane %v1016, %v1022
        %v1024 = vcombine.low %v999, %v1007
        %v1025 = vcombine.high %v999, %v1007
        %v1027 = vunpack.c.l.s4 1934713408
        %v1028 = vunpack.c.0.s8 %v1027
        %v1029 = vlaneseq
        %v1030 = vshrl.u32 %v1029, 7
        %v1031 = vsub.s32 %v1028, %v1030
        %v1032 = vrot.slane %v1024, %v1031
        %v1034 = vunpack.c.l.s4 1934713408
        %v1035 = vunpack.c.0.s8 %v1034
        %v1036 = vlaneseq
        %v1037 = vshrl.u32 %v1036, 7
        %v1038 = vsub.s32 %v1035, %v1037
        %v1039 = vrot.slane %v1025, %v1038
        %v1040 = vcombine.low %v1015, %v1023
        %v1041 = vcombine.high %v1015, %v1023
        %v1043 = vunpack.c.l.s4 1934713408
        %v1044 = vunpack.c.0.s8 %v1043
        %v1045 = vlaneseq
        %v1046 = vshrl.u32 %v1045, 7
        %v1047 = vsub.s32 %v1044, %v1046
        %v1048 = vrot.slane %v1040, %v1047
        %v1050 = vunpack.c.l.s4 1934713408
        %v1051 = vunpack.c.0.s8 %v1050
        %v1052 = vlaneseq
        %v1053 = vshrl.u32 %v1052, 7
        %v1054 = vsub.s32 %v1051, %v1053
        %v1055 = vrot.slane %v1041, %v1054
        %v1056 = vcombine.low %v1032, %v1048
        %v1057 = vcombine.high %v1032, %v1048
        %v1058 = vcombine.low %v1039, %v1055
        %v1059 = vcombine.high %v1039, %v1055
        %v1060 = vpack.c.bf16 %v1056, %v1056
        %v1061 = vpack.c.bf16 %v1057, %v1057
        %v1062 = vpack.c.bf16 %v1058, %v1058
        %v1063 = vpack.c.bf16 %v1059, %v1059
        %1065 = vrot.lane.b32.xlu0 %v761, 120
        %v1066 = vpop.permute.xlu0 %1065
        %1068 = vrot.lane.b32.xlu0 %v761, 112
        %v1069 = vpop.permute.xlu0 %1068
        %1071 = vrot.lane.b32.xlu0 %v761, 104
        %v1072 = vpop.permute.xlu0 %1071
        %v1074 = vcombine.low %v761, %v1069
        %v1075 = vcombine.high %v761, %v1069
        %v1077 = vunpack.c.l.s4 1983009808
        %v1078 = vunpack.c.0.s8 %v1077
        %v1079 = vlaneseq
        %v1080 = vshrl.u32 %v1079, 7
        %v1081 = vsub.s32 %v1078, %v1080
        %v1082 = vrot.slane %v1074, %v1081
        %v1084 = vunpack.c.l.s4 1983009808
        %v1085 = vunpack.c.0.s8 %v1084
        %v1086 = vlaneseq
        %v1087 = vshrl.u32 %v1086, 7
        %v1088 = vsub.s32 %v1085, %v1087
        %v1089 = vrot.slane %v1075, %v1088
        %v1090 = vcombine.low %v1066, %v1072
        %v1091 = vcombine.high %v1066, %v1072
        %v1093 = vunpack.c.l.s4 1983009808
        %v1094 = vunpack.c.0.s8 %v1093
        %v1095 = vlaneseq
        %v1096 = vshrl.u32 %v1095, 7
        %v1097 = vsub.s32 %v1094, %v1096
        %v1098 = vrot.slane %v1090, %v1097
        %v1100 = vunpack.c.l.s4 1983009808
        %v1101 = vunpack.c.0.s8 %v1100
        %v1102 = vlaneseq
        %v1103 = vshrl.u32 %v1102, 7
        %v1104 = vsub.s32 %v1101, %v1103
        %v1105 = vrot.slane %v1091, %v1104
        %v1106 = vcombine.low %v1082, %v1098
        %v1107 = vcombine.high %v1082, %v1098
        %v1109 = vunpack.c.l.s4 1934713408
        %v1110 = vunpack.c.0.s8 %v1109
        %v1111 = vlaneseq
        %v1112 = vshrl.u32 %v1111, 7
        %v1113 = vsub.s32 %v1110, %v1112
        %v1114 = vrot.slane %v1106, %v1113
        %v1116 = vunpack.c.l.s4 1934713408
        %v1117 = vunpack.c.0.s8 %v1116
        %v1118 = vlaneseq
        %v1119 = vshrl.u32 %v1118, 7
        %v1120 = vsub.s32 %v1117, %v1119
        %v1121 = vrot.slane %v1107, %v1120
        %v1122 = vcombine.low %v1089, %v1105
        %v1123 = vcombine.high %v1089, %v1105
        %v1125 = vunpack.c.l.s4 1934713408
        %v1126 = vunpack.c.0.s8 %v1125
        %v1127 = vlaneseq
        %v1128 = vshrl.u32 %v1127, 7
        %v1129 = vsub.s32 %v1126, %v1128
        %v1130 = vrot.slane %v1122, %v1129
        %v1132 = vunpack.c.l.s4 1934713408
        %v1133 = vunpack.c.0.s8 %v1132
        %v1134 = vlaneseq
        %v1135 = vshrl.u32 %v1134, 7
        %v1136 = vsub.s32 %v1133, %v1135
        %v1137 = vrot.slane %v1123, %v1136
        %v1138 = vcombine.high %v1114, 0.0
        %v1139 = vcombine.high %v1121, 0.0
        %v1140 = vcombine.high %v1130, 0.0
        %v1141 = vcombine.high %v1137, 0.0
        %v1142 = vcombine.low %v1114, %v1121
        %v1144 = vunpack.c.l.s4 1983009808
        %v1145 = vunpack.c.0.s8 %v1144
        %v1146 = vlaneseq
        %v1147 = vshrl.u32 %v1146, 7
        %v1148 = vsub.s32 %v1145, %v1147
        %v1149 = vrot.slane %v1142, %v1148
        %v1150 = vcombine.low %v1138, %v1139
        %v1152 = vunpack.c.l.s4 1983009808
        %v1153 = vunpack.c.0.s8 %v1152
        %v1154 = vlaneseq
        %v1155 = vshrl.u32 %v1154, 7
        %v1156 = vsub.s32 %v1153, %v1155
        %v1157 = vrot.slane %v1150, %v1156
        %v1158 = vcombine.low %v1130, %v1137
        %v1160 = vunpack.c.l.s4 1983009808
        %v1161 = vunpack.c.0.s8 %v1160
        %v1162 = vlaneseq
        %v1163 = vshrl.u32 %v1162, 7
        %v1164 = vsub.s32 %v1161, %v1163
        %v1165 = vrot.slane %v1158, %v1164
        %v1166 = vcombine.low %v1140, %v1141
        %v1168 = vunpack.c.l.s4 1983009808
        %v1169 = vunpack.c.0.s8 %v1168
        %v1170 = vlaneseq
        %v1171 = vshrl.u32 %v1170, 7
        %v1172 = vsub.s32 %v1169, %v1171
        %v1173 = vrot.slane %v1166, %v1172
        %v1174 = vcombine.low %v1149, %v1157
        %v1175 = vcombine.high %v1149, %v1157
        %v1177 = vunpack.c.l.s4 1934713408
        %v1178 = vunpack.c.0.s8 %v1177
        %v1179 = vlaneseq
        %v1180 = vshrl.u32 %v1179, 7
        %v1181 = vsub.s32 %v1178, %v1180
        %v1182 = vrot.slane %v1174, %v1181
        %v1184 = vunpack.c.l.s4 1934713408
        %v1185 = vunpack.c.0.s8 %v1184
        %v1186 = vlaneseq
        %v1187 = vshrl.u32 %v1186, 7
        %v1188 = vsub.s32 %v1185, %v1187
        %v1189 = vrot.slane %v1175, %v1188
        %v1190 = vcombine.low %v1165, %v1173
        %v1191 = vcombine.high %v1165, %v1173
        %v1193 = vunpack.c.l.s4 1934713408
        %v1194 = vunpack.c.0.s8 %v1193
        %v1195 = vlaneseq
        %v1196 = vshrl.u32 %v1195, 7
        %v1197 = vsub.s32 %v1194, %v1196
        %v1198 = vrot.slane %v1190, %v1197
        %v1200 = vunpack.c.l.s4 1934713408
        %v1201 = vunpack.c.0.s8 %v1200
        %v1202 = vlaneseq
        %v1203 = vshrl.u32 %v1202, 7
        %v1204 = vsub.s32 %v1201, %v1203
        %v1205 = vrot.slane %v1191, %v1204
        %v1206 = vcombine.low %v1182, %v1198
        %v1207 = vcombine.high %v1182, %v1198
        %v1208 = vcombine.low %v1189, %v1205
        %v1209 = vcombine.high %v1189, %v1205
        %v1210 = vpack.c.bf16 %v1206, %v1206
        %v1211 = vpack.c.bf16 %v1207, %v1207
        %v1212 = vpack.c.bf16 %v1208, %v1208
        %v1213 = vpack.c.bf16 %v1209, %v1209
        %vm1214 = vcmask 64512
        %v1216 = vsel %vm1214, %v910, 0
        %v1219 = vsel %vm1214, %v1060, 0
        %1221 = vmatprep.subr.bf16.mxu0 0
        %1222 = vmatpush1.bf16.xpose.msra.mxu0 0
        %1223 = vmatprep.subr.bf16.mxu0 0
        %1224 = vmatpush1.bf16.xpose.msra.mxu0 0
        %1225 = vmatprep.subr.bf16.mxu0 0
        %1226 = vmatpush1.bf16.xpose.msra.mxu0 0
        %1227 = vmatprep.subr.bf16.mxu0 0
        %1228 = vmatpush1.bf16.xpose.msra.mxu0 0
        %1229 = vmatprep.subr.bf16.mxu0 0
        %1230 = vmatpush1.bf16.xpose.msra.mxu0 0
        %1231 = vmatprep.subr.bf16.mxu0 0
        %1232 = vmatpush1.bf16.xpose.msra.mxu0 0
        %1233 = vmatprep.subr.bf16.mxu0 0
        %1234 = vmatpush1.bf16.xpose.msra.mxu0 0
        %1235 = vmatprep.subr.bf16.mxu0 0
        %1236 = vmatpush1.bf16.xpose.msra.mxu0 %v1219
        %1237 = vmatprep.subr.bf16.mxu0 0
        %1238 = vmatpush2.bf16.xpose.msra.mxu0 0
        %1239 = vmatprep.subr.bf16.mxu0 0
        %1240 = vmatpush2.bf16.xpose.msra.mxu0 0
        %1241 = vmatprep.subr.bf16.mxu0 0
        %1242 = vmatpush2.bf16.xpose.msra.mxu0 0
        %1243 = vmatprep.subr.bf16.mxu0 0
        %1244 = vmatpush2.bf16.xpose.msra.mxu0 0
        %1245 = vmatprep.subr.bf16.mxu0 0
        %1246 = vmatpush2.bf16.xpose.msra.mxu0 0
        %1247 = vmatprep.subr.bf16.mxu0 0
        %1248 = vmatpush2.bf16.xpose.msra.mxu0 0
        %1249 = vmatprep.subr.bf16.mxu0 0
        %1250 = vmatpush2.bf16.xpose.msra.mxu0 0
        %1251 = vmatprep.subr.bf16.mxu0 0
        %1252 = vmatpush2.bf16.xpose.msra.mxu0 0
        %1253 = vmatprep.mubr.bf16.mxu0 0
        %1254 = vmatmul.mubr.bf16.gmra.mxu0 %v1216
        %v1255 = vpop.f32.mrf.mxu0
        %v1256 = vadd.f32 0.0, %v1255
        %v1257 = vpop.f32.mrf.mxu0
        %v1258 = vpop.f32.mrf.mxu0
        %v1259 = vpop.f32.mrf.mxu0
        %1260 = vdwg.mxu0
        %v1262 = vsel %vm1214, %v911, 0
        %v1265 = vsel %vm1214, %v1061, 0
        %1267 = vmatprep.subr.bf16.mxu0 0
        %1268 = vmatpush1.bf16.xpose.msra.mxu0 0
        %1269 = vmatprep.subr.bf16.mxu0 0
        %1270 = vmatpush1.bf16.xpose.msra.mxu0 0
        %1271 = vmatprep.subr.bf16.mxu0 0
        %1272 = vmatpush1.bf16.xpose.msra.mxu0 0
        %1273 = vmatprep.subr.bf16.mxu0 0
        %1274 = vmatpush1.bf16.xpose.msra.mxu0 0
        %1275 = vmatprep.subr.bf16.mxu0 0
        %1276 = vmatpush1.bf16.xpose.msra.mxu0 0
        %1277 = vmatprep.subr.bf16.mxu0 0
        %1278 = vmatpush1.bf16.xpose.msra.mxu0 0
        %1279 = vmatprep.subr.bf16.mxu0 0
        %1280 = vmatpush1.bf16.xpose.msra.mxu0 0
        %1281 = vmatprep.subr.bf16.mxu0 0
        %1282 = vmatpush1.bf16.xpose.msra.mxu0 %v1265
        %1283 = vmatprep.subr.bf16.mxu0 0
        %1284 = vmatpush2.bf16.xpose.msra.mxu0 0
        %1285 = vmatprep.subr.bf16.mxu0 0
        %1286 = vmatpush2.bf16.xpose.msra.mxu0 0
        %1287 = vmatprep.subr.bf16.mxu0 0
        %1288 = vmatpush2.bf16.xpose.msra.mxu0 0
        %1289 = vmatprep.subr.bf16.mxu0 0
        %1290 = vmatpush2.bf16.xpose.msra.mxu0 0
        %1291 = vmatprep.subr.bf16.mxu0 0
        %1292 = vmatpush2.bf16.xpose.msra.mxu0 0
        %1293 = vmatprep.subr.bf16.mxu0 0
        %1294 = vmatpush2.bf16.xpose.msra.mxu0 0
        %1295 = vmatprep.subr.bf16.mxu0 0
        %1296 = vmatpush2.bf16.xpose.msra.mxu0 0
        %1297 = vmatprep.subr.bf16.mxu0 0
        %1298 = vmatpush2.bf16.xpose.msra.mxu0 0
        %1299 = vmatprep.mubr.bf16.mxu0 0
        %1300 = vmatmul.mubr.bf16.gmra.mxu0 %v1262
        %v1301 = vpop.f32.mrf.mxu0
        %v1302 = vadd.f32 0.0, %v1301
        %v1303 = vpop.f32.mrf.mxu0
        %v1304 = vpop.f32.mrf.mxu0
        %v1305 = vpop.f32.mrf.mxu0
        %1306 = vdwg.mxu0
        %v1308 = vsel %vm1214, %v912, 0
        %v1311 = vsel %vm1214, %v1062, 0
        %1313 = vmatprep.subr.bf16.mxu0 0
        %1314 = vmatpush1.bf16.xpose.msra.mxu0 0
        %1315 = vmatprep.subr.bf16.mxu0 0
        %1316 = vmatpush1.bf16.xpose.msra.mxu0 0
        %1317 = vmatprep.subr.bf16.mxu0 0
        %1318 = vmatpush1.bf16.xpose.msra.mxu0 0
        %1319 = vmatprep.subr.bf16.mxu0 0
        %1320 = vmatpush1.bf16.xpose.msra.mxu0 0
        %1321 = vmatprep.subr.bf16.mxu0 0
        %1322 = vmatpush1.bf16.xpose.msra.mxu0 0
        %1323 = vmatprep.subr.bf16.mxu0 0
        %1324 = vmatpush1.bf16.xpose.msra.mxu0 0
        %1325 = vmatprep.subr.bf16.mxu0 0
        %1326 = vmatpush1.bf16.xpose.msra.mxu0 0
        %1327 = vmatprep.subr.bf16.mxu0 0
        %1328 = vmatpush1.bf16.xpose.msra.mxu0 %v1311
        %1329 = vmatprep.subr.bf16.mxu0 0
        %1330 = vmatpush2.bf16.xpose.msra.mxu0 0
        %1331 = vmatprep.subr.bf16.mxu0 0
        %1332 = vmatpush2.bf16.xpose.msra.mxu0 0
        %1333 = vmatprep.subr.bf16.mxu0 0
        %1334 = vmatpush2.bf16.xpose.msra.mxu0 0
        %1335 = vmatprep.subr.bf16.mxu0 0
        %1336 = vmatpush2.bf16.xpose.msra.mxu0 0
        %1337 = vmatprep.subr.bf16.mxu0 0
        %1338 = vmatpush2.bf16.xpose.msra.mxu0 0
        %1339 = vmatprep.subr.bf16.mxu0 0
        %1340 = vmatpush2.bf16.xpose.msra.mxu0 0
        %1341 = vmatprep.subr.bf16.mxu0 0
        %1342 = vmatpush2.bf16.xpose.msra.mxu0 0
        %1343 = vmatprep.subr.bf16.mxu0 0
        %1344 = vmatpush2.bf16.xpose.msra.mxu0 0
        %1345 = vmatprep.mubr.bf16.mxu0 0
        %1346 = vmatmul.mubr.bf16.gmra.mxu0 %v1308
        %v1347 = vpop.f32.mrf.mxu0
        %v1348 = vadd.f32 0.0, %v1347
        %v1349 = vpop.f32.mrf.mxu0
        %v1350 = vpop.f32.mrf.mxu0
        %v1351 = vpop.f32.mrf.mxu0
        %1352 = vdwg.mxu0
        %v1354 = vsel %vm1214, %v913, 0
        %v1357 = vsel %vm1214, %v1063, 0
        %1359 = vmatprep.subr.bf16.mxu0 0
        %1360 = vmatpush1.bf16.xpose.msra.mxu0 0
        %1361 = vmatprep.subr.bf16.mxu0 0
        %1362 = vmatpush1.bf16.xpose.msra.mxu0 0
        %1363 = vmatprep.subr.bf16.mxu0 0
        %1364 = vmatpush1.bf16.xpose.msra.mxu0 0
        %1365 = vmatprep.subr.bf16.mxu0 0
        %1366 = vmatpush1.bf16.xpose.msra.mxu0 0
        %1367 = vmatprep.subr.bf16.mxu0 0
        %1368 = vmatpush1.bf16.xpose.msra.mxu0 0
        %1369 = vmatprep.subr.bf16.mxu0 0
        %1370 = vmatpush1.bf16.xpose.msra.mxu0 0
        %1371 = vmatprep.subr.bf16.mxu0 0
        %1372 = vmatpush1.bf16.xpose.msra.mxu0 0
        %1373 = vmatprep.subr.bf16.mxu0 0
        %1374 = vmatpush1.bf16.xpose.msra.mxu0 %v1357
        %1375 = vmatprep.subr.bf16.mxu0 0
        %1376 = vmatpush2.bf16.xpose.msra.mxu0 0
        %1377 = vmatprep.subr.bf16.mxu0 0
        %1378 = vmatpush2.bf16.xpose.msra.mxu0 0
        %1379 = vmatprep.subr.bf16.mxu0 0
        %1380 = vmatpush2.bf16.xpose.msra.mxu0 0
        %1381 = vmatprep.subr.bf16.mxu0 0
        %1382 = vmatpush2.bf16.xpose.msra.mxu0 0
        %1383 = vmatprep.subr.bf16.mxu0 0
        %1384 = vmatpush2.bf16.xpose.msra.mxu0 0
        %1385 = vmatprep.subr.bf16.mxu0 0
        %1386 = vmatpush2.bf16.xpose.msra.mxu0 0
        %1387 = vmatprep.subr.bf16.mxu0 0
        %1388 = vmatpush2.bf16.xpose.msra.mxu0 0
        %1389 = vmatprep.subr.bf16.mxu0 0
        %1390 = vmatpush2.bf16.xpose.msra.mxu0 0
        %1391 = vmatprep.mubr.bf16.mxu0 0
        %1392 = vmatmul.mubr.bf16.gmra.mxu0 %v1354
        %v1393 = vpop.f32.mrf.mxu0
        %v1394 = vadd.f32 0.0, %v1393
        %v1395 = vpop.f32.mrf.mxu0
        %v1396 = vpop.f32.mrf.mxu0
        %v1397 = vpop.f32.mrf.mxu0
        %1398 = vdwg.mxu0
        %v1399 = vld [vmem:[%s506] sm:$0xf]
        %v1400 = vunpack.c.l.bf16 %v1399
        %v1401 = vadd.f32 %v1256, %v1400
        %v1402 = vadd.f32 %v1302, %v1400
        %v1403 = vadd.f32 %v1348, %v1400
        %v1404 = vadd.f32 %v1394, %v1400
        %v1405 = vsel %vm1214, %v1401, -inf
        %1406 = vmax.xlane.f32.xlu0 %v1405
        %v1407 = vpop.xlane.xlu0 %1406
        %v1408 = vsel %vm1214, %v1402, -inf
        %1409 = vmax.xlane.f32.xlu0 %v1408
        %v1410 = vpop.xlane.xlu0 %1409
        %v1411 = vsel %vm1214, %v1403, -inf
        %1412 = vmax.xlane.f32.xlu0 %v1411
        %v1413 = vpop.xlane.xlu0 %1412
        %v1414 = vsel %vm1214, %v1404, -inf
        %1415 = vmax.xlane.f32.xlu0 %v1414
        %v1416 = vpop.xlane.xlu0 %1415
        %v1417 = vsub.f32 %v1401, %v1407
        %v1418 = vsub.f32 %v1402, %v1410
        %v1419 = vsub.f32 %v1403, %v1413
        %v1420 = vsub.f32 %v1404, %v1416
        %v1421 = vmul.f32 %v1417, 1.442695
        %v1422 = vpow.pop %v1421
        %v1423 = vmul.f32 %v1418, 1.442695
        %v1424 = vpow.pop %v1423
        %v1425 = vmul.f32 %v1419, 1.442695
        %v1426 = vpow.pop %v1425
        %v1427 = vmul.f32 %v1420, 1.442695
        %v1428 = vpow.pop %v1427
        %v1429 = vsel %vm1214, %v1422, 0.0
        %1430 = vadd.xlane.f32.xlu0 %v1429
        %v1431 = vpop.xlane.xlu0 %1430
        %v1432 = vsel %vm1214, %v1424, 0.0
        %1433 = vadd.xlane.f32.xlu0 %v1432
        %v1434 = vpop.xlane.xlu0 %1433
        %v1435 = vsel %vm1214, %v1426, 0.0
        %1436 = vadd.xlane.f32.xlu0 %v1435
        %v1437 = vpop.xlane.xlu0 %1436
        %v1438 = vsel %vm1214, %v1428, 0.0
        %1439 = vadd.xlane.f32.xlu0 %v1438
        %v1440 = vpop.xlane.xlu0 %1439
        %v1441 = vpack.c.bf16 %v1422, %v1422
        %v1442 = vpack.c.bf16 %v1424, %v1424
        %v1443 = vpack.c.bf16 %v1426, %v1426
        %v1444 = vpack.c.bf16 %v1428, %v1428
        %v1446 = vsel %vm1214, %v1441, 0
        %vm1448 = vcmask 1043456
        %v1450 = vsel %vm1448, %v1210, 0
        %1452 = vmatprep.subr.bf16.mxu0 0
        %1453 = vmatpush1.bf16.msra.mxu0 0
        %1454 = vmatprep.subr.bf16.mxu0 0
        %1455 = vmatpush1.bf16.msra.mxu0 0
        %1456 = vmatprep.subr.bf16.mxu0 0
        %1457 = vmatpush1.bf16.msra.mxu0 0
        %1458 = vmatprep.subr.bf16.mxu0 0
        %1459 = vmatpush1.bf16.msra.mxu0 0
        %1460 = vmatprep.subr.bf16.mxu0 0
        %1461 = vmatpush1.bf16.msra.mxu0 0
        %1462 = vmatprep.subr.bf16.mxu0 0
        %1463 = vmatpush1.bf16.msra.mxu0 0
        %1464 = vmatprep.subr.bf16.mxu0 0
        %1465 = vmatpush1.bf16.msra.mxu0 0
        %1466 = vmatprep.subr.bf16.mxu0 0
        %1467 = vmatpush1.bf16.msra.mxu0 %v1450
        %1468 = vmatprep.subr.bf16.mxu0 0
        %1469 = vmatpush2.bf16.msra.mxu0 0
        %1470 = vmatprep.subr.bf16.mxu0 0
        %1471 = vmatpush2.bf16.msra.mxu0 0
        %1472 = vmatprep.subr.bf16.mxu0 0
        %1473 = vmatpush2.bf16.msra.mxu0 0
        %1474 = vmatprep.subr.bf16.mxu0 0
        %1475 = vmatpush2.bf16.msra.mxu0 0
        %1476 = vmatprep.subr.bf16.mxu0 0
        %1477 = vmatpush2.bf16.msra.mxu0 0
        %1478 = vmatprep.subr.bf16.mxu0 0
        %1479 = vmatpush2.bf16.msra.mxu0 0
        %1480 = vmatprep.subr.bf16.mxu0 0
        %1481 = vmatpush2.bf16.msra.mxu0 0
        %1482 = vmatprep.subr.bf16.mxu0 0
        %1483 = vmatpush2.bf16.msra.mxu0 0
        %1484 = vmatprep.mubr.bf16.mxu0 0
        %1485 = vmatmul.mubr.bf16.gmra.mxu0 %v1446
        %v1486 = vpop.f32.mrf.mxu0
        %v1487 = vadd.f32 0.0, %v1486
        %v1488 = vpop.f32.mrf.mxu0
        %v1489 = vpop.f32.mrf.mxu0
        %v1490 = vpop.f32.mrf.mxu0
        %1491 = vdwg.mxu0
        %v1493 = vsel %vm1214, %v1442, 0
        %v1496 = vsel %vm1448, %v1211, 0
        %1498 = vmatprep.subr.bf16.mxu0 0
        %1499 = vmatpush1.bf16.msra.mxu0 0
        %1500 = vmatprep.subr.bf16.mxu0 0
        %1501 = vmatpush1.bf16.msra.mxu0 0
        %1502 = vmatprep.subr.bf16.mxu0 0
        %1503 = vmatpush1.bf16.msra.mxu0 0
        %1504 = vmatprep.subr.bf16.mxu0 0
        %1505 = vmatpush1.bf16.msra.mxu0 0
        %1506 = vmatprep.subr.bf16.mxu0 0
        %1507 = vmatpush1.bf16.msra.mxu0 0
        %1508 = vmatprep.subr.bf16.mxu0 0
        %1509 = vmatpush1.bf16.msra.mxu0 0
        %1510 = vmatprep.subr.bf16.mxu0 0
        %1511 = vmatpush1.bf16.msra.mxu0 0
        %1512 = vmatprep.subr.bf16.mxu0 0
        %1513 = vmatpush1.bf16.msra.mxu0 %v1496
        %1514 = vmatprep.subr.bf16.mxu0 0
        %1515 = vmatpush2.bf16.msra.mxu0 0
        %1516 = vmatprep.subr.bf16.mxu0 0
        %1517 = vmatpush2.bf16.msra.mxu0 0
        %1518 = vmatprep.subr.bf16.mxu0 0
        %1519 = vmatpush2.bf16.msra.mxu0 0
        %1520 = vmatprep.subr.bf16.mxu0 0
        %1521 = vmatpush2.bf16.msra.mxu0 0
        %1522 = vmatprep.subr.bf16.mxu0 0
        %1523 = vmatpush2.bf16.msra.mxu0 0
        %1524 = vmatprep.subr.bf16.mxu0 0
        %1525 = vmatpush2.bf16.msra.mxu0 0
        %1526 = vmatprep.subr.bf16.mxu0 0
        %1527 = vmatpush2.bf16.msra.mxu0 0
        %1528 = vmatprep.subr.bf16.mxu0 0
        %1529 = vmatpush2.bf16.msra.mxu0 0
        %1530 = vmatprep.mubr.bf16.mxu0 0
        %1531 = vmatmul.mubr.bf16.gmra.mxu0 %v1493
        %v1532 = vpop.f32.mrf.mxu0
        %v1533 = vadd.f32 0.0, %v1532
        %v1534 = vpop.f32.mrf.mxu0
        %v1535 = vpop.f32.mrf.mxu0
        %v1536 = vpop.f32.mrf.mxu0
        %1537 = vdwg.mxu0
        %v1539 = vsel %vm1214, %v1443, 0
        %v1542 = vsel %vm1448, %v1212, 0
        %1544 = vmatprep.subr.bf16.mxu0 0
        %1545 = vmatpush1.bf16.msra.mxu0 0
        %1546 = vmatprep.subr.bf16.mxu0 0
        %1547 = vmatpush1.bf16.msra.mxu0 0
        %1548 = vmatprep.subr.bf16.mxu0 0
        %1549 = vmatpush1.bf16.msra.mxu0 0
        %1550 = vmatprep.subr.bf16.mxu0 0
        %1551 = vmatpush1.bf16.msra.mxu0 0
        %1552 = vmatprep.subr.bf16.mxu0 0
        %1553 = vmatpush1.bf16.msra.mxu0 0
        %1554 = vmatprep.subr.bf16.mxu0 0
        %1555 = vmatpush1.bf16.msra.mxu0 0
        %1556 = vmatprep.subr.bf16.mxu0 0
        %1557 = vmatpush1.bf16.msra.mxu0 0
        %1558 = vmatprep.subr.bf16.mxu0 0
        %1559 = vmatpush1.bf16.msra.mxu0 %v1542
        %1560 = vmatprep.subr.bf16.mxu0 0
        %1561 = vmatpush2.bf16.msra.mxu0 0
        %1562 = vmatprep.subr.bf16.mxu0 0
        %1563 = vmatpush2.bf16.msra.mxu0 0
        %1564 = vmatprep.subr.bf16.mxu0 0
        %1565 = vmatpush2.bf16.msra.mxu0 0
        %1566 = vmatprep.subr.bf16.mxu0 0
        %1567 = vmatpush2.bf16.msra.mxu0 0
        %1568 = vmatprep.subr.bf16.mxu0 0
        %1569 = vmatpush2.bf16.msra.mxu0 0
        %1570 = vmatprep.subr.bf16.mxu0 0
        %1571 = vmatpush2.bf16.msra.mxu0 0
        %1572 = vmatprep.subr.bf16.mxu0 0
        %1573 = vmatpush2.bf16.msra.mxu0 0
        %1574 = vmatprep.subr.bf16.mxu0 0
        %1575 = vmatpush2.bf16.msra.mxu0 0
        %1576 = vmatprep.mubr.bf16.mxu0 0
        %1577 = vmatmul.mubr.bf16.gmra.mxu0 %v1539
        %v1578 = vpop.f32.mrf.mxu0
        %v1579 = vadd.f32 0.0, %v1578
        %v1580 = vpop.f32.mrf.mxu0
        %v1581 = vpop.f32.mrf.mxu0
        %v1582 = vpop.f32.mrf.mxu0
        %1583 = vdwg.mxu0
        %v1585 = vsel %vm1214, %v1444, 0
        %v1588 = vsel %vm1448, %v1213, 0
        %1590 = vmatprep.subr.bf16.mxu0 0
        %1591 = vmatpush1.bf16.msra.mxu0 0
        %1592 = vmatprep.subr.bf16.mxu0 0
        %1593 = vmatpush1.bf16.msra.mxu0 0
        %1594 = vmatprep.subr.bf16.mxu0 0
        %1595 = vmatpush1.bf16.msra.mxu0 0
        %1596 = vmatprep.subr.bf16.mxu0 0
        %1597 = vmatpush1.bf16.msra.mxu0 0
        %1598 = vmatprep.subr.bf16.mxu0 0
        %1599 = vmatpush1.bf16.msra.mxu0 0
        %1600 = vmatprep.subr.bf16.mxu0 0
        %1601 = vmatpush1.bf16.msra.mxu0 0
        %1602 = vmatprep.subr.bf16.mxu0 0
        %1603 = vmatpush1.bf16.msra.mxu0 0
        %1604 = vmatprep.subr.bf16.mxu0 0
        %1605 = vmatpush1.bf16.msra.mxu0 %v1588
        %1606 = vmatprep.subr.bf16.mxu0 0
        %1607 = vmatpush2.bf16.msra.mxu0 0
        %1608 = vmatprep.subr.bf16.mxu0 0
        %1609 = vmatpush2.bf16.msra.mxu0 0
        %1610 = vmatprep.subr.bf16.mxu0 0
        %1611 = vmatpush2.bf16.msra.mxu0 0
        %1612 = vmatprep.subr.bf16.mxu0 0
        %1613 = vmatpush2.bf16.msra.mxu0 0
        %1614 = vmatprep.subr.bf16.mxu0 0
        %1615 = vmatpush2.bf16.msra.mxu0 0
        %1616 = vmatprep.subr.bf16.mxu0 0
        %1617 = vmatpush2.bf16.msra.mxu0 0
        %1618 = vmatprep.subr.bf16.mxu0 0
        %1619 = vmatpush2.bf16.msra.mxu0 0
        %1620 = vmatprep.subr.bf16.mxu0 0
        %1621 = vmatpush2.bf16.msra.mxu0 0
        %1622 = vmatprep.mubr.bf16.mxu0 0
        %1623 = vmatmul.mubr.bf16.gmra.mxu0 %v1585
        %v1624 = vpop.f32.mrf.mxu0
        %v1625 = vadd.f32 0.0, %v1624
        %v1626 = vpop.f32.mrf.mxu0
        %v1627 = vpop.f32.mrf.mxu0
        %v1628 = vpop.f32.mrf.mxu0
        %1629 = vdwg.mxu0
        %v1630 = vrcp.pop %v1431
        %v1631 = vrcp.pop %v1434
        %v1632 = vrcp.pop %v1437
        %v1633 = vrcp.pop %v1440
        %v1634 = vmul.f32 %v1487, %v1630
        %v1635 = vmul.f32 %v1533, %v1631
        %v1636 = vmul.f32 %v1579, %v1632
        %v1637 = vmul.f32 %v1625, %v1633
        %v1638 = vcombine.low %v1634, %v1636
        %v1639 = vcombine.high %v1634, %v1636
        %v1641 = vunpack.c.l.s4 1983009808
        %v1642 = vunpack.c.0.s8 %v1641
        %v1643 = vlaneseq
        %v1644 = vshrl.u32 %v1643, 7
        %v1645 = vsub.s32 %v1642, %v1644
        %v1646 = vrot.slane %v1638, %v1645
        %v1648 = vunpack.c.l.s4 1983009808
        %v1649 = vunpack.c.0.s8 %v1648
        %v1650 = vlaneseq
        %v1651 = vshrl.u32 %v1650, 7
        %v1652 = vsub.s32 %v1649, %v1651
        %v1653 = vrot.slane %v1639, %v1652
        %v1654 = vcombine.low %v1635, %v1637
        %v1655 = vcombine.high %v1635, %v1637
        %v1657 = vunpack.c.l.s4 1983009808
        %v1658 = vunpack.c.0.s8 %v1657
        %v1659 = vlaneseq
        %v1660 = vshrl.u32 %v1659, 7
        %v1661 = vsub.s32 %v1658, %v1660
        %v1662 = vrot.slane %v1654, %v1661
        %v1664 = vunpack.c.l.s4 1983009808
        %v1665 = vunpack.c.0.s8 %v1664
        %v1666 = vlaneseq
        %v1667 = vshrl.u32 %v1666, 7
        %v1668 = vsub.s32 %v1665, %v1667
        %v1669 = vrot.slane %v1655, %v1668
        %v1670 = vcombine.low %v1646, %v1662
        %v1671 = vcombine.high %v1646, %v1662
        %v1673 = vunpack.c.l.s4 1934713408
        %v1674 = vunpack.c.0.s8 %v1673
        %v1675 = vlaneseq
        %v1676 = vshrl.u32 %v1675, 7
        %v1677 = vsub.s32 %v1674, %v1676
        %v1678 = vrot.slane %v1670, %v1677
        %v1680 = vunpack.c.l.s4 1934713408
        %v1681 = vunpack.c.0.s8 %v1680
        %v1682 = vlaneseq
        %v1683 = vshrl.u32 %v1682, 7
        %v1684 = vsub.s32 %v1681, %v1683
        %v1685 = vrot.slane %v1671, %v1684
        %v1686 = vcombine.low %v1653, %v1669
        %v1687 = vcombine.high %v1653, %v1669
        %v1689 = vunpack.c.l.s4 1934713408
        %v1690 = vunpack.c.0.s8 %v1689
        %v1691 = vlaneseq
        %v1692 = vshrl.u32 %v1691, 7
        %v1693 = vsub.s32 %v1690, %v1692
        %v1694 = vrot.slane %v1686, %v1693
        %v1696 = vunpack.c.l.s4 1934713408
        %v1697 = vunpack.c.0.s8 %v1696
        %v1698 = vlaneseq
        %v1699 = vshrl.u32 %v1698, 7
        %v1700 = vsub.s32 %v1697, %v1699
        %v1701 = vrot.slane %v1687, %v1700
        %v1702 = vcombine.high %v1678, 0.0
        %v1703 = vcombine.high %v1685, 0.0
        %v1704 = vcombine.high %v1694, 0.0
        %v1705 = vcombine.high %v1701, 0.0
        %v1706 = vcombine.low %v1678, %v1685
        %v1708 = vunpack.c.l.s4 1983009808
        %v1709 = vunpack.c.0.s8 %v1708
        %v1710 = vlaneseq
        %v1711 = vshrl.u32 %v1710, 7
        %v1712 = vsub.s32 %v1709, %v1711
        %v1713 = vrot.slane %v1706, %v1712
        %v1714 = vcombine.low %v1702, %v1703
        %v1716 = vunpack.c.l.s4 1983009808
        %v1717 = vunpack.c.0.s8 %v1716
        %v1718 = vlaneseq
        %v1719 = vshrl.u32 %v1718, 7
        %v1720 = vsub.s32 %v1717, %v1719
        %v1721 = vrot.slane %v1714, %v1720
        %v1722 = vcombine.low %v1694, %v1701
        %v1724 = vunpack.c.l.s4 1983009808
        %v1725 = vunpack.c.0.s8 %v1724
        %v1726 = vlaneseq
        %v1727 = vshrl.u32 %v1726, 7
        %v1728 = vsub.s32 %v1725, %v1727
        %v1729 = vrot.slane %v1722, %v1728
        %v1730 = vcombine.low %v1704, %v1705
        %v1732 = vunpack.c.l.s4 1983009808
        %v1733 = vunpack.c.0.s8 %v1732
        %v1734 = vlaneseq
        %v1735 = vshrl.u32 %v1734, 7
        %v1736 = vsub.s32 %v1733, %v1735
        %v1737 = vrot.slane %v1730, %v1736
        %v1738 = vcombine.low %v1713, %v1721
        %v1739 = vcombine.high %v1713, %v1721
        %v1741 = vunpack.c.l.s4 1934713408
        %v1742 = vunpack.c.0.s8 %v1741
        %v1743 = vlaneseq
        %v1744 = vshrl.u32 %v1743, 7
        %v1745 = vsub.s32 %v1742, %v1744
        %v1746 = vrot.slane %v1738, %v1745
        %v1748 = vunpack.c.l.s4 1934713408
        %v1749 = vunpack.c.0.s8 %v1748
        %v1750 = vlaneseq
        %v1751 = vshrl.u32 %v1750, 7
        %v1752 = vsub.s32 %v1749, %v1751
        %v1753 = vrot.slane %v1739, %v1752
        %v1754 = vcombine.low %v1729, %v1737
        %v1755 = vcombine.high %v1729, %v1737
        %v1757 = vunpack.c.l.s4 1934713408
        %v1758 = vunpack.c.0.s8 %v1757
        %v1759 = vlaneseq
        %v1760 = vshrl.u32 %v1759, 7
        %v1761 = vsub.s32 %v1758, %v1760
        %v1762 = vrot.slane %v1754, %v1761
        %v1764 = vunpack.c.l.s4 1934713408
        %v1765 = vunpack.c.0.s8 %v1764
        %v1766 = vlaneseq
        %v1767 = vshrl.u32 %v1766, 7
        %v1768 = vsub.s32 %v1765, %v1767
        %v1769 = vrot.slane %v1755, %v1768
        %v1770 = vcombine.low %v1746, %v1762
        %v1771 = vcombine.high %v1746, %v1762
        %v1772 = vcombine.low %v1753, %v1769
        %v1773 = vcombine.high %v1753, %v1769
        %1775 = vrot.lane.b32.xlu0 %v1771, 8
        %v1776 = vpop.permute.xlu0 %1775
        %1779 = vrot.lane.b32.xlu0 %v1772, 16
        %v1780 = vpop.permute.xlu0 %1779
        %1783 = vrot.lane.b32.xlu0 %v1773, 24
        %v1784 = vpop.permute.xlu0 %1783
        %v1786 = vsel %vm1214, %v1770, %v1776
        %vm1787 = vcmask 130048
        %v1788 = vsel %vm1787, %v1786, %v1780
        %vm1789 = vcmask 195584
        %v1790 = vsel %vm1789, %v1788, %v1784
        %1791 = vst.msk [vmem:[%s502] sm:$0xff] %vm520, %v1790
        %s1792 = sand.u32 %s270, 1
        %s1793 = scalar_lea.sflag [#allocation4], %s1792
        %s1794 = sand.u32 %s270, 1
        %s1795 = smul.addr %s1794, 8
        %s1796 = scalar_lea.vmem [#allocation13], %s1795
        // Predicated region
        $region85: #{tpu_custom_call.1} parent=59 // pred_check
          %p1797 = pneg %p280
        $region86: #{tpu_custom_call.1} parent=59 // pred_check_branch
          %1799 = sbr.rel (%p1797) target = $region88
        $region87: #{tpu_custom_call.1} parent=59 // pred_region
          %s1801 = ssub.s32 128, 128
          %1802 = vsyncadd %s1793, %s1801
          %s1803 = smul.addr %s32, 128
          %s1804 = scalar_lea.hbm %s10, %s1803
          %s1806 = sshll.u32 %s1796, 4
          %s1807 = int_to_ptr.vmem [resolvable:$true] %s1806
          %1809 = dma.vmem_to_hbm [thread:$0]  %s1807, 128, %s1804, %s1793
        $region88: #{tpu_custom_call.1} parent=59 // pred_fallthru
          _
      $region60: #{tpu_custom_call.1} parent=5 // pred_fallthru
        _
      %p1810 = scmp.le.s32.totalorder 2, %s27
      // Predicated region
      $region89: #{tpu_custom_call.1} parent=5 // pred_check
        %p1811 = pneg %p1810
      $region90: #{tpu_custom_call.1} parent=5 // pred_check_branch
        %1813 = sbr.rel (%p1811) target = $region92
      $region91: #{tpu_custom_call.1} parent=5 // pred_region
        %s1814 = ssub.s32 %s27, 2
        // Predicated region
        $region93: #{tpu_custom_call.1} parent=91 // pred_check
          %p1815 = pneg %p286
        $region94: #{tpu_custom_call.1} parent=91 // pred_check_branch
          %1817 = sbr.rel (%p1815) target = $region96
        $region95: #{tpu_custom_call.1} parent=91 // pred_region
          %s1818 = sand.u32 %s271, 1
          %s1819 = scalar_lea.sflag [#allocation4], %s1818
          %s1820 = sand.u32 %s271, 1
          %s1821 = smul.addr %s1820, 8
          %s1822 = scalar_lea.vmem [#allocation13], %s1821
          %1823 = dma.done %s1819, 128
        $region96: #{tpu_custom_call.1} parent=91 // pred_fallthru
          _
      $region92: #{tpu_custom_call.1} parent=5 // pred_fallthru
        _
    $region6: #{tpu_custom_call.1} parent=1 // loop_footer
      %s31 = sadd.s32 1, %s27
    $region7: #{tpu_custom_call.1} parent=1 // loop_footer_branch
      %26 = sbr.rel target = $region3
    $region8: #{tpu_custom_call.1} parent=1 // loop_exit
      _
    %1824 = vsyncpa [#allocation3], 1
    %s1825 = scalar_lea.sflag [#allocation3], 1
    %1826 = vsyncpa %s1825, 1
    %1827 = vsyncpa [#allocation6], 1
    %s1828 = scalar_lea.sflag [#allocation6], 1
    %1829 = vsyncpa %s1828, 1
    %1830 = vsyncpa [#allocation9], 1
    %1831 = vsyncpa [#allocation12], 1
    %1832 = vsyncpa [#allocation4], 1
    %s1833 = scalar_lea.sflag [#allocation4], 1
    %1834 = vsyncpa %s1833, 1

</llo_original>
